<compile_context>
chip_gen: v5e
topology: v5e:2x2
jax: 0.10.0
libtpu: 0.0.40
codegen_flags: <defaults>
</compile_context>

<pallas_src>
import functools

import jax
import jax.numpy as jnp
from jax.experimental import pallas as pl
from jax.experimental.pallas import tpu as pltpu

# ---------------------------------------------------------------------------
# Static model configuration (synthetic instantiation of the wrapper module)
# ---------------------------------------------------------------------------
CIN = 4          # conv input channels
CF = 32          # conv output channels (= feature dim fed to the heads)
N_CLS = 10       # cls_head output dim
N_PROJ = 16      # proj_head output dim
OUT_LANES = 128  # packed output lanes: [cls(10) | proj(16) | feat(32) | pad]


def _round_up(x, m):
    return (x + m - 1) // m * m


# ---------------------------------------------------------------------------
# Fused kernel: in-kernel im2col (9 shifted matmuls) + bias + ReLU
#               + masked mean pool (matmul) + fused bf16 heads
# ---------------------------------------------------------------------------
def _fused_kernel(x_ref, m_ref, wc_ref, bc_ref, wh_ref, bh_ref, out_ref, *, q, wp):
    # x_ref : [1, R, CIN]   bf16  spatially padded, row-flattened NHWC image
    # m_ref : [1, q]        bf16  pooling row: 1/(H*W) at valid positions else 0
    # wc_ref: [9, CIN, CF]  bf16  conv taps (tap = ki*3 + kj)
    # bc_ref: [1, CF]       f32   conv bias
    # wh_ref: [CF, 128]     bf16  fused heads: [w_cls | w_proj | I_CF | 0]
    # bh_ref: [1, 128]      f32   fused head bias: [b_cls | b_proj | 0]
    # out_ref:[1, 1, 128]   f32   packed [cls | proj | feat | 0]
    x = x_ref[0].astype(jnp.float32)          # [R, CIN]; f32 for robust slicing
    wc = wc_ref[...]                          # [9, CIN, CF] bf16 (resident)

    # 3x3 conv as 9 shifted, accumulating matmuls (bf16 operands, f32 acc).
    acc = None
    for ki in range(3):
        for kj in range(3):
            t = ki * 3 + kj
            off = ki * wp + kj
            xt = x[off:off + q, :].astype(jnp.bfloat16)          # [q, CIN]
            part = jnp.dot(xt, wc[t], preferred_element_type=jnp.float32)
            acc = part if acc is None else acc + part            # [q, CF] f32

    # bias + ReLU
    conv = jnp.maximum(acc + bc_ref[...], 0.0)                   # [q, CF] f32

    # masked global-average-pool: mask row already carries the 1/(H*W) scale
    pooled = jnp.dot(m_ref[...], conv.astype(jnp.bfloat16),
                     preferred_element_type=jnp.float32)         # [1, CF] f32

    # fused heads (+ feature passthrough) in bf16 on the MXU, f32 bias add
    heads = jnp.dot(pooled.astype(jnp.bfloat16), wh_ref[...],
                    preferred_element_type=jnp.float32) + bh_ref[...]  # [1, 128]
    out_ref[...] = heads[None]


def fused_network_kernel(xflat, mrow, w_conv, b_conv, w_heads, b_heads, *, q, wp):
    B, R, cin = xflat.shape

    cost = pl.CostEstimate(
        flops=B * (2 * 9 * q * cin * CF + 2 * q * CF + 2 * CF * OUT_LANES),
        transcendentals=0,
        bytes_accessed=(
            xflat.size * xflat.dtype.itemsize
            + mrow.size * mrow.dtype.itemsize
            + w_conv.size * w_conv.dtype.itemsize
            + b_conv.size * 4
            + w_heads.size * w_heads.dtype.itemsize
            + b_heads.size * 4
            + B * OUT_LANES * 4
        ),
    )

    kernel = functools.partial(_fused_kernel, q=q, wp=wp)

    return pl.pallas_call(
        kernel,
        out_shape=jax.ShapeDtypeStruct((B, 1, OUT_LANES), jnp.float32),
        grid_spec=pltpu.PrefetchScalarGridSpec(
            num_scalar_prefetch=0,
            grid=(B,),
            in_specs=[
                pl.BlockSpec((1, R, cin), lambda b: (b, 0, 0)),
                pl.BlockSpec((1, q), lambda b: (0, 0)),
                pl.BlockSpec((9, cin, CF), lambda b: (0, 0, 0)),
                pl.BlockSpec((1, CF), lambda b: (0, 0)),
                pl.BlockSpec((CF, OUT_LANES), lambda b: (0, 0)),
                pl.BlockSpec((1, OUT_LANES), lambda b: (0, 0)),
            ],
            out_specs=pl.BlockSpec((1, 1, OUT_LANES), lambda b: (b, 0, 0)),
        ),
        compiler_params=pltpu.CompilerParams(
            dimension_semantics=("parallel",),
        ),
        cost_estimate=cost,
    )(xflat, mrow, w_conv, b_conv, w_heads, b_heads)


# ---------------------------------------------------------------------------
# Parameter init (raw, f32) + packing into kernel-friendly operands
# ---------------------------------------------------------------------------
def init_params(key, cin=CIN, cf=CF, n_cls=N_CLS, n_proj=N_PROJ):
    k1, k2, k3, k4, k5, k6 = jax.random.split(key, 6)
    # conv weight stored as [kh*kw*Cin, Cf] (tap-major, channel-minor rows)
    w_conv = jax.random.normal(k1, (3 * 3 * cin, cf), jnp.float32) * 0.05
    b_conv = jax.random.normal(k2, (1, cf), jnp.float32) * 0.01
    w_cls = jax.random.normal(k3, (cf, n_cls), jnp.float32) * 0.1
    b_cls = jax.random.normal(k4, (1, n_cls), jnp.float32) * 0.01
    w_proj = jax.random.normal(k5, (cf, n_proj), jnp.float32) * 0.1
    b_proj = jax.random.normal(k6, (1, n_proj), jnp.float32) * 0.01
    return dict(w_conv=w_conv, b_conv=b_conv, w_cls=w_cls, b_cls=b_cls,
                w_proj=w_proj, b_proj=b_proj)


def pack_params(p):
    """One-time packing of the weights into kernel operands (no K/C padding)."""
    cf = p["w_conv"].shape[1]
    w_conv = p["w_conv"].reshape(9, CIN, cf).astype(jnp.bfloat16)   # per-tap
    b_conv = p["b_conv"].astype(jnp.float32)                        # [1, CF]
    # fused head weight: columns = [w_cls | w_proj | I_Cf (feat passthrough) | 0]
    w_heads = jnp.zeros((cf, OUT_LANES), jnp.float32)
    w_heads = w_heads.at[:, :N_CLS].set(p["w_cls"])
    w_heads = w_heads.at[:, N_CLS:N_CLS + N_PROJ].set(p["w_proj"])
    w_heads = w_heads.at[:, N_CLS + N_PROJ:N_CLS + N_PROJ + cf].set(
        jnp.eye(cf, dtype=jnp.float32))
    w_heads = w_heads.astype(jnp.bfloat16)
    b_heads = jnp.zeros((1, OUT_LANES), jnp.float32)
    b_heads = b_heads.at[:, :N_CLS].set(p["b_cls"])
    b_heads = b_heads.at[:, N_CLS:N_CLS + N_PROJ].set(p["b_proj"])
    return dict(w_conv=w_conv, b_conv=b_conv, w_heads=w_heads, b_heads=b_heads)


# ---------------------------------------------------------------------------
# Network forward (matches the PyTorch module semantics)
# ---------------------------------------------------------------------------
@functools.partial(jax.jit, static_argnames=("training",))
def network_forward(packed, x_nchw, training=False):
    B, C, H, W = x_nchw.shape
    Hp, Wp = H + 2, W + 2
    Q = H * Wp                                   # number of flattened conv rows
    R = _round_up(Q + 2 * Wp + 2, 8)             # rows needed so all taps in-bounds

    # minimal glue (fused by XLA): NCHW -> NHWC, spatial zero-pad, flatten, bf16
    x = jnp.transpose(x_nchw, (0, 2, 3, 1))                      # [B, H, W, C]
    xp = jnp.pad(x, ((0, 0), (1, 1), (1, 1), (0, 0)))            # [B, Hp, Wp, C]
    xflat = xp.reshape(B, Hp * Wp, C)
    xflat = jnp.pad(xflat, ((0, 0), (0, R - Hp * Wp), (0, 0))).astype(jnp.bfloat16)

    # pooling row: 1/(H*W) at valid flattened positions, 0 at pad columns
    # (constant-folded by XLA: depends only on static H, W)
    qi = jnp.arange(Q, dtype=jnp.int32)
    mrow = ((qi % Wp) < W).astype(jnp.float32) * (1.0 / (H * W))
    mrow = mrow.reshape(1, Q).astype(jnp.bfloat16)

    out = fused_network_kernel(
        xflat, mrow, packed["w_conv"], packed["b_conv"],
        packed["w_heads"], packed["b_heads"], q=Q, wp=Wp,
    )                                                            # [B, 1, 128]
    out = out.reshape(B, OUT_LANES)

    cls_out = out[:, :N_CLS]
    if training:
        proj_out = out[:, N_CLS:N_CLS + N_PROJ]
        feats = out[:, N_CLS + N_PROJ:N_CLS + N_PROJ + CF]
        return cls_out, proj_out, feats
    return cls_out


# ---------------------------------------------------------------------------
# Pure-JAX f32 reference (for correctness checking only; NOT the kernel path)
# ---------------------------------------------------------------------------
def im2col_3x3(x_nhwc):
    B, H, W, C = x_nhwc.shape
    xp = jnp.pad(x_nhwc, ((0, 0), (1, 1), (1, 1), (0, 0)))
    cols = [xp[:, ki:ki + H, kj:kj + W, :] for ki in range(3) for kj in range(3)]
    patches = jnp.concatenate(cols, axis=-1)                 # [B, H, W, 9*C]
    return patches.reshape(B, H * W, 9 * C)


def reference_forward(params, x_nchw):
    x = jnp.transpose(x_nchw, (0, 2, 3, 1)).astype(jnp.float32)
    patches = im2col_3x3(x)                                  # [B, HW, 36] f32
    conv = jnp.maximum(
        jnp.einsum("bpk,kc->bpc", patches, params["w_conv"]) + params["b_conv"],
        0.0,
    )
    feats = conv.mean(axis=1)                                # [B, 32]
    cls = feats @ params["w_cls"] + params["b_cls"]
    proj = feats @ params["w_proj"] + params["b_proj"]
    return cls, proj, feats


if __name__ == "__main__":
    key = jax.random.PRNGKey(0)
    pkey, xkey = jax.random.split(key)
    params = init_params(pkey)
    packed = pack_params(params)

    # small input consistent with the module: batch=2, channels=4, spatial=16
    x = jax.random.normal(xkey, (2, 4, 16, 16), jnp.float32)

    # eval path (self.training == False): returns cls_head(backbone(x))
    cls_out = network_forward(packed, x, training=False)
    cls_out = jax.block_until_ready(cls_out)
    assert cls_out.shape == (2, N_CLS)

    # training path: (cls_head(f), proj_head(f), f)
    cls_t, proj_t, feat_t = network_forward(packed, x, training=True)
    jax.block_until_ready((cls_t, proj_t, feat_t))
    assert cls_t.shape == (2, N_CLS)
    assert proj_t.shape == (2, N_PROJ)
    assert feat_t.shape == (2, CF)

    # numerical check vs pure-JAX f32 reference (bf16 conv/head operands -> loose tol)
    ref_cls, ref_proj, ref_feat = reference_forward(params, x)
    assert jnp.allclose(cls_t, ref_cls, atol=1e-2, rtol=1e-2)
    assert jnp.allclose(proj_t, ref_proj, atol=1e-2, rtol=1e-2)
    assert jnp.allclose(feat_t, ref_feat, atol=1e-2, rtol=1e-2)
    assert jnp.allclose(cls_out, ref_cls, atol=1e-2, rtol=1e-2)

    print("KERNEL_OK")
</pallas_src>

<mosaic_0001>
module attributes {stable_mosaic.version = 11 : i64} {
  func.func @_fused_kernel(%arg0: i32, %arg1: memref<1x328x4xbf16, #tpu.memory_space<vmem>>, %arg2: memref<1x288xbf16, #tpu.memory_space<vmem>>, %arg3: memref<9x4x32xbf16, #tpu.memory_space<vmem>>, %arg4: memref<1x32xf32, #tpu.memory_space<vmem>>, %arg5: memref<32x128xbf16, #tpu.memory_space<vmem>>, %arg6: memref<1x128xf32, #tpu.memory_space<vmem>>, %arg7: memref<1x1x128xf32, #tpu.memory_space<vmem>>) attributes {dimension_semantics = [#tpu.dimension_semantics<parallel>], iteration_bounds = array<i64: 2>, scalar_prefetch = 0 : i64, scratch_operands = 0 : i64, tpu.core_type = #tpu.core_type<tc>, window_params = [{transform_indices = @transform_0, window_bounds = array<i64: 1, 328, 4>}, {pipeline_mode = #tpu.pipeline_mode<synchronous>, transform_indices = @transform_1, window_bounds = array<i64: 1, 288>}, {pipeline_mode = #tpu.pipeline_mode<synchronous>, transform_indices = @transform_2, window_bounds = array<i64: 9, 4, 32>}, {pipeline_mode = #tpu.pipeline_mode<synchronous>, transform_indices = @transform_3, window_bounds = array<i64: 1, 32>}, {pipeline_mode = #tpu.pipeline_mode<synchronous>, transform_indices = @transform_4, window_bounds = array<i64: 32, 128>}, {pipeline_mode = #tpu.pipeline_mode<synchronous>, transform_indices = @transform_5, window_bounds = array<i64: 1, 128>}, {transform_indices = @transform_6, window_bounds = array<i64: 1, 1, 128>}]} {
    %c0 = arith.constant 0 : index
    %c0_0 = arith.constant 0 : index
    %c0_1 = arith.constant 0 : index
    %0 = vector.load %arg1[%c0, %c0_0, %c0_1] : memref<1x328x4xbf16, #tpu.memory_space<vmem>>, vector<1x328x4xbf16>
    %1 = vector.shape_cast %0 : vector<1x328x4xbf16> to vector<328x4xbf16>
    %2 = arith.extf %1 : vector<328x4xbf16> to vector<328x4xf32>
    %c0_2 = arith.constant 0 : index
    %c0_3 = arith.constant 0 : index
    %c0_4 = arith.constant 0 : index
    %3 = vector.load %arg3[%c0_2, %c0_3, %c0_4] : memref<9x4x32xbf16, #tpu.memory_space<vmem>>, vector<9x4x32xbf16>
    %4 = vector.extract_strided_slice %2 {offsets = [0, 0], sizes = [288, 4], strides = [1, 1]} : vector<328x4xf32> to vector<288x4xf32>
    %5 = arith.truncf %4 : vector<288x4xf32> to vector<288x4xbf16>
    %6 = vector.extract_strided_slice %3 {offsets = [0, 0, 0], sizes = [1, 4, 32], strides = [1, 1, 1]} : vector<9x4x32xbf16> to vector<1x4x32xbf16>
    %7 = vector.shape_cast %6 : vector<1x4x32xbf16> to vector<4x32xbf16>
    %cst = arith.constant dense<0.000000e+00> : vector<288x32xf32>
    %8 = tpu.matmul %5, %7, %cst {dimension_numbers = #tpu.dot_dimension_numbers<[1], [0], [0], [1], [0, 0, 1, 1], [], []>} : vector<288x4xbf16>, vector<4x32xbf16>, vector<288x32xf32> -> vector<288x32xf32>
    %9 = vector.extract_strided_slice %2 {offsets = [1, 0], sizes = [288, 4], strides = [1, 1]} : vector<328x4xf32> to vector<288x4xf32>
    %10 = arith.truncf %9 : vector<288x4xf32> to vector<288x4xbf16>
    %11 = vector.extract_strided_slice %3 {offsets = [1, 0, 0], sizes = [1, 4, 32], strides = [1, 1, 1]} : vector<9x4x32xbf16> to vector<1x4x32xbf16>
    %12 = vector.shape_cast %11 : vector<1x4x32xbf16> to vector<4x32xbf16>
    %cst_5 = arith.constant dense<0.000000e+00> : vector<288x32xf32>
    %13 = tpu.matmul %10, %12, %cst_5 {dimension_numbers = #tpu.dot_dimension_numbers<[1], [0], [0], [1], [0, 0, 1, 1], [], []>} : vector<288x4xbf16>, vector<4x32xbf16>, vector<288x32xf32> -> vector<288x32xf32>
    %14 = arith.addf %8, %13 : vector<288x32xf32>
    %15 = vector.extract_strided_slice %2 {offsets = [2, 0], sizes = [288, 4], strides = [1, 1]} : vector<328x4xf32> to vector<288x4xf32>
    %16 = arith.truncf %15 : vector<288x4xf32> to vector<288x4xbf16>
    %17 = vector.extract_strided_slice %3 {offsets = [2, 0, 0], sizes = [1, 4, 32], strides = [1, 1, 1]} : vector<9x4x32xbf16> to vector<1x4x32xbf16>
    %18 = vector.shape_cast %17 : vector<1x4x32xbf16> to vector<4x32xbf16>
    %cst_6 = arith.constant dense<0.000000e+00> : vector<288x32xf32>
    %19 = tpu.matmul %16, %18, %cst_6 {dimension_numbers = #tpu.dot_dimension_numbers<[1], [0], [0], [1], [0, 0, 1, 1], [], []>} : vector<288x4xbf16>, vector<4x32xbf16>, vector<288x32xf32> -> vector<288x32xf32>
    %20 = arith.addf %14, %19 : vector<288x32xf32>
    %21 = vector.extract_strided_slice %2 {offsets = [18, 0], sizes = [288, 4], strides = [1, 1]} : vector<328x4xf32> to vector<288x4xf32>
    %22 = arith.truncf %21 : vector<288x4xf32> to vector<288x4xbf16>
    %23 = vector.extract_strided_slice %3 {offsets = [3, 0, 0], sizes = [1, 4, 32], strides = [1, 1, 1]} : vector<9x4x32xbf16> to vector<1x4x32xbf16>
    %24 = vector.shape_cast %23 : vector<1x4x32xbf16> to vector<4x32xbf16>
    %cst_7 = arith.constant dense<0.000000e+00> : vector<288x32xf32>
    %25 = tpu.matmul %22, %24, %cst_7 {dimension_numbers = #tpu.dot_dimension_numbers<[1], [0], [0], [1], [0, 0, 1, 1], [], []>} : vector<288x4xbf16>, vector<4x32xbf16>, vector<288x32xf32> -> vector<288x32xf32>
    %26 = arith.addf %20, %25 : vector<288x32xf32>
    %27 = vector.extract_strided_slice %2 {offsets = [19, 0], sizes = [288, 4], strides = [1, 1]} : vector<328x4xf32> to vector<288x4xf32>
    %28 = arith.truncf %27 : vector<288x4xf32> to vector<288x4xbf16>
    %29 = vector.extract_strided_slice %3 {offsets = [4, 0, 0], sizes = [1, 4, 32], strides = [1, 1, 1]} : vector<9x4x32xbf16> to vector<1x4x32xbf16>
    %30 = vector.shape_cast %29 : vector<1x4x32xbf16> to vector<4x32xbf16>
    %cst_8 = arith.constant dense<0.000000e+00> : vector<288x32xf32>
    %31 = tpu.matmul %28, %30, %cst_8 {dimension_numbers = #tpu.dot_dimension_numbers<[1], [0], [0], [1], [0, 0, 1, 1], [], []>} : vector<288x4xbf16>, vector<4x32xbf16>, vector<288x32xf32> -> vector<288x32xf32>
    %32 = arith.addf %26, %31 : vector<288x32xf32>
    %33 = vector.extract_strided_slice %2 {offsets = [20, 0], sizes = [288, 4], strides = [1, 1]} : vector<328x4xf32> to vector<288x4xf32>
    %34 = arith.truncf %33 : vector<288x4xf32> to vector<288x4xbf16>
    %35 = vector.extract_strided_slice %3 {offsets = [5, 0, 0], sizes = [1, 4, 32], strides = [1, 1, 1]} : vector<9x4x32xbf16> to vector<1x4x32xbf16>
    %36 = vector.shape_cast %35 : vector<1x4x32xbf16> to vector<4x32xbf16>
    %cst_9 = arith.constant dense<0.000000e+00> : vector<288x32xf32>
    %37 = tpu.matmul %34, %36, %cst_9 {dimension_numbers = #tpu.dot_dimension_numbers<[1], [0], [0], [1], [0, 0, 1, 1], [], []>} : vector<288x4xbf16>, vector<4x32xbf16>, vector<288x32xf32> -> vector<288x32xf32>
    %38 = arith.addf %32, %37 : vector<288x32xf32>
    %39 = vector.extract_strided_slice %2 {offsets = [36, 0], sizes = [288, 4], strides = [1, 1]} : vector<328x4xf32> to vector<288x4xf32>
    %40 = arith.truncf %39 : vector<288x4xf32> to vector<288x4xbf16>
    %41 = vector.extract_strided_slice %3 {offsets = [6, 0, 0], sizes = [1, 4, 32], strides = [1, 1, 1]} : vector<9x4x32xbf16> to vector<1x4x32xbf16>
    %42 = vector.shape_cast %41 : vector<1x4x32xbf16> to vector<4x32xbf16>
    %cst_10 = arith.constant dense<0.000000e+00> : vector<288x32xf32>
    %43 = tpu.matmul %40, %42, %cst_10 {dimension_numbers = #tpu.dot_dimension_numbers<[1], [0], [0], [1], [0, 0, 1, 1], [], []>} : vector<288x4xbf16>, vector<4x32xbf16>, vector<288x32xf32> -> vector<288x32xf32>
    %44 = arith.addf %38, %43 : vector<288x32xf32>
    %45 = vector.extract_strided_slice %2 {offsets = [37, 0], sizes = [288, 4], strides = [1, 1]} : vector<328x4xf32> to vector<288x4xf32>
    %46 = arith.truncf %45 : vector<288x4xf32> to vector<288x4xbf16>
    %47 = vector.extract_strided_slice %3 {offsets = [7, 0, 0], sizes = [1, 4, 32], strides = [1, 1, 1]} : vector<9x4x32xbf16> to vector<1x4x32xbf16>
    %48 = vector.shape_cast %47 : vector<1x4x32xbf16> to vector<4x32xbf16>
    %cst_11 = arith.constant dense<0.000000e+00> : vector<288x32xf32>
    %49 = tpu.matmul %46, %48, %cst_11 {dimension_numbers = #tpu.dot_dimension_numbers<[1], [0], [0], [1], [0, 0, 1, 1], [], []>} : vector<288x4xbf16>, vector<4x32xbf16>, vector<288x32xf32> -> vector<288x32xf32>
    %50 = arith.addf %44, %49 : vector<288x32xf32>
    %51 = vector.extract_strided_slice %2 {offsets = [38, 0], sizes = [288, 4], strides = [1, 1]} : vector<328x4xf32> to vector<288x4xf32>
    %52 = arith.truncf %51 : vector<288x4xf32> to vector<288x4xbf16>
    %53 = vector.extract_strided_slice %3 {offsets = [8, 0, 0], sizes = [1, 4, 32], strides = [1, 1, 1]} : vector<9x4x32xbf16> to vector<1x4x32xbf16>
    %54 = vector.shape_cast %53 : vector<1x4x32xbf16> to vector<4x32xbf16>
    %cst_12 = arith.constant dense<0.000000e+00> : vector<288x32xf32>
    %55 = tpu.matmul %52, %54, %cst_12 {dimension_numbers = #tpu.dot_dimension_numbers<[1], [0], [0], [1], [0, 0, 1, 1], [], []>} : vector<288x4xbf16>, vector<4x32xbf16>, vector<288x32xf32> -> vector<288x32xf32>
    %56 = arith.addf %50, %55 : vector<288x32xf32>
    %c0_13 = arith.constant 0 : index
    %c0_14 = arith.constant 0 : index
    %57 = vector.load %arg4[%c0_13, %c0_14] : memref<1x32xf32, #tpu.memory_space<vmem>>, vector<1x32xf32>
    %58 = vector.broadcast %57 : vector<1x32xf32> to vector<288x32xf32>
    %59 = arith.addf %56, %58 : vector<288x32xf32>
    %cst_15 = arith.constant 0.000000e+00 : f32
    %60 = vector.broadcast %cst_15 : f32 to vector<288x32xf32>
    %61 = arith.maximumf %59, %60 : vector<288x32xf32>
    %c0_16 = arith.constant 0 : index
    %c0_17 = arith.constant 0 : index
    %62 = vector.load %arg2[%c0_16, %c0_17] : memref<1x288xbf16, #tpu.memory_space<vmem>>, vector<1x288xbf16>
    %63 = arith.truncf %61 : vector<288x32xf32> to vector<288x32xbf16>
    %cst_18 = arith.constant dense<0.000000e+00> : vector<1x32xf32>
    %64 = tpu.matmul %62, %63, %cst_18 {dimension_numbers = #tpu.dot_dimension_numbers<[1], [0], [0], [1], [0, 0, 1, 1], [], []>} : vector<1x288xbf16>, vector<288x32xbf16>, vector<1x32xf32> -> vector<1x32xf32>
    %65 = arith.truncf %64 : vector<1x32xf32> to vector<1x32xbf16>
    %c0_19 = arith.constant 0 : index
    %c0_20 = arith.constant 0 : index
    %66 = vector.load %arg5[%c0_19, %c0_20] : memref<32x128xbf16, #tpu.memory_space<vmem>>, vector<32x128xbf16>
    %cst_21 = arith.constant dense<0.000000e+00> : vector<1x128xf32>
    %67 = tpu.matmul %65, %66, %cst_21 {dimension_numbers = #tpu.dot_dimension_numbers<[1], [0], [0], [1], [0, 0, 1, 1], [], []>} : vector<1x32xbf16>, vector<32x128xbf16>, vector<1x128xf32> -> vector<1x128xf32>
    %c0_22 = arith.constant 0 : index
    %c0_23 = arith.constant 0 : index
    %68 = vector.load %arg6[%c0_22, %c0_23] : memref<1x128xf32, #tpu.memory_space<vmem>>, vector<1x128xf32>
    %69 = arith.addf %67, %68 : vector<1x128xf32>
    %70 = vector.shape_cast %69 : vector<1x128xf32> to vector<1x1x128xf32>
    %c0_24 = arith.constant 0 : index
    %c0_25 = arith.constant 0 : index
    %c0_26 = arith.constant 0 : index
    %71 = vector.load %arg7[%c0_24, %c0_25, %c0_26] : memref<1x1x128xf32, #tpu.memory_space<vmem>>, vector<1x1x128xf32>
    tpu.vector_store %arg7[%c0_24, %c0_25, %c0_26], %70 {strides = array<i32>} : memref<1x1x128xf32, #tpu.memory_space<vmem>>, vector<1x1x128xf32>,
    return
  }
  func.func @transform_0(%arg0: i32) -> (i32, i32, i32) {
    %c0_i32 = arith.constant 0 : i32
    %c0_i32_0 = arith.constant 0 : i32
    %c0_i32_1 = arith.constant 0 : i32
    return %arg0, %c0_i32, %c0_i32_0 : i32, i32, i32
  }
  func.func @transform_1(%arg0: i32) -> (i32, i32) {
    %c0_i32 = arith.constant 0 : i32
    %c0_i32_0 = arith.constant 0 : i32
    %c0_i32_1 = arith.constant 0 : i32
    return %c0_i32, %c0_i32_0 : i32, i32
  }
  func.func @transform_2(%arg0: i32) -> (i32, i32, i32) {
    %c0_i32 = arith.constant 0 : i32
    %c0_i32_0 = arith.constant 0 : i32
    %c0_i32_1 = arith.constant 0 : i32
    %c0_i32_2 = arith.constant 0 : i32
    return %c0_i32, %c0_i32_0, %c0_i32_1 : i32, i32, i32
  }
  func.func @transform_3(%arg0: i32) -> (i32, i32) {
    %c0_i32 = arith.constant 0 : i32
    %c0_i32_0 = arith.constant 0 : i32
    %c0_i32_1 = arith.constant 0 : i32
    return %c0_i32, %c0_i32_0 : i32, i32
  }
  func.func @transform_4(%arg0: i32) -> (i32, i32) {
    %c0_i32 = arith.constant 0 : i32
    %c0_i32_0 = arith.constant 0 : i32
    %c0_i32_1 = arith.constant 0 : i32
    return %c0_i32, %c0_i32_0 : i32, i32
  }
  func.func @transform_5(%arg0: i32) -> (i32, i32) {
    %c0_i32 = arith.constant 0 : i32
    %c0_i32_0 = arith.constant 0 : i32
    %c0_i32_1 = arith.constant 0 : i32
    return %c0_i32, %c0_i32_0 : i32, i32
  }
  func.func @transform_6(%arg0: i32) -> (i32, i32, i32) {
    %c0_i32 = arith.constant 0 : i32
    %c0_i32_0 = arith.constant 0 : i32
    %c0_i32_1 = arith.constant 0 : i32
    return %arg0, %c0_i32, %c0_i32_0 : i32, i32, i32
  }
}

</mosaic_0001>

<llo_original>
// kernel: network_forward.1
$region0: #{network_forward.1}
  #allocation0 [shape = 'u32[]', space=smem, size = 0x4, offset = 0x4, fixed_abs, tag = 'smem constant byte address 0x4 - core index']
  #allocation1 [shape = 'u32[72,128]{1,0:T(1,128)}', space=vmem, size = 0x9000, scoped, tag = 'internal scratch']
  %s0 = inlined_call_operand.vmem [shape: bf16[2,328,4], index: 0, kind: input, shape index: {}]
  %s1 = inlined_call_operand.vmem [shape: bf16[1,288], index: 1, kind: input, shape index: {}]
  %s2 = inlined_call_operand.vmem [shape: bf16[9,4,32], index: 2, kind: input, shape index: {}]
  %s3 = inlined_call_operand.vmem [shape: f32[1,32], index: 3, kind: input, shape index: {}]
  %s4 = inlined_call_operand.vmem [shape: bf16[32,128], index: 4, kind: input, shape index: {}]
  %s5 = inlined_call_operand.vmem [shape: f32[1,128], index: 5, kind: input, shape index: {}]
  %s6 = inlined_call_operand.hbm [shape: f32[2,1,128], index: 6, kind: output, shape index: {}]
  %s7 = sld [smem:[#allocation0]]
  $region57: #{network_forward.1} parent=0
    _
  %s9 = ssub.s32 1, %s7
  %s10 = scalar_select 0, %s9, %s7
  $region1: #{network_forward.1} parent=0
    #allocation2 [shape = 'u8[1024]{0}', space=vmem, size = 0x400, scoped, tag = 'output window, operand 0']
    #allocation3 [shape = 's32[2]{0}', space=sflag, size = 0x8, scoped, tag = 'scoped memory for network_forward.1']
    %11 = vsyncpa [#allocation3], 0
    %s12 = scalar_lea.sflag [#allocation3], 1
    %13 = vsyncpa %s12, 0
    loop: start=0, step=1, limit=4
    $region2: #{network_forward.1} parent=1 // loop_pre_header
      _
    $region3: #{network_forward.1} parent=1 // loop_header
      %s15 = sphi 0, %s19
      %p16 = scmp.ge.s32.totalorder %s15, 4
      %s25 = sphi 0, %s27
      %s28 = sphi 0, %s25
      %s29 = sphi 0, %s28
      %s45 = sphi 0, %s29
      %s49 = sphi 0, %s49
      %s51 = sphi 0, %s49
      %s52 = sphi 0, %s51
      %s66 = sphi 0, %s52
      %s70 = sphi 0, %s70
      %s72 = sphi 0, %s70
      %s73 = sphi 0, %s72
      %s87 = sphi 0, %s73
      %s91 = sphi 0, %s91
      %s93 = sphi 0, %s91
      %s94 = sphi 0, %s93
      %s108 = sphi 0, %s94
      %s112 = sphi 0, %s112
      %s114 = sphi 0, %s112
      %s115 = sphi 0, %s114
      %s129 = sphi 0, %s115
      %s133 = sphi 0, %s133
      %s135 = sphi 0, %s133
      %s136 = sphi 0, %s135
      %s150 = sphi 0, %s136
      %s156 = sphi 0, %s158
      %s159 = sphi 0, %s156
      %s160 = sphi 0, %s159
      %s176 = sphi 0, %s160
    $region4: #{network_forward.1} parent=1 // loop_header_branch
      %18 = sbr.rel (%p16) target = $region8
    $region5: #{network_forward.1} parent=1 // loop_body
      %s20 = ssub.s32 %s15, 1
      %s21 = ssub.s32 %s15, 2
      %s22 = sadd.s32 %s15, 1
      %s23 = ssub.s32 %s15, %s22
      %p24 = scmp.eq.s32.totalorder %s23, 0
      %s26 = sadd.s32 %s25, 1
      %s27 = scalar_select %p24, %s25, %s26
      %p30 = pneg %p24
      %p31 = scmp.eq.s32.totalorder %s15, 1
      %p32 = por %p30, %p31
      %p33 = scmp.ne.s32.totalorder %s25, %s28
      %p34 = scmp.eq.s32.totalorder %s15, 0
      %p35 = por %p33, %p34
      %p36 = scmp.ne.s32.totalorder %s25, %s28
      %p37 = scmp.eq.s32.totalorder %s20, 1
      %p38 = por %p36, %p37
      %p39 = scmp.ne.s32.totalorder %s28, %s29
      %p40 = scmp.eq.s32.totalorder %s20, 0
      %p41 = por %p39, %p40
      %p42 = scmp.ne.s32.totalorder %s28, %s29
      %p43 = scmp.eq.s32.totalorder %s21, 1
      %p44 = por %p42, %p43
      %p46 = scmp.ne.s32.totalorder %s29, %s45
      %p47 = scmp.eq.s32.totalorder %s21, 0
      %p48 = por %p46, %p47
      %s50 = sadd.s32 %s49, 1
      %p53 = scmp.eq.s32.totalorder %s15, 1
      %p54 = scmp.ne.s32.totalorder %s49, %s51
      %p55 = scmp.eq.s32.totalorder %s15, 0
      %p56 = por %p54, %p55
      %p57 = scmp.ne.s32.totalorder %s49, %s51
      %p58 = scmp.eq.s32.totalorder %s20, 1
      %p59 = por %p57, %p58
      %p60 = scmp.ne.s32.totalorder %s51, %s52
      %p61 = scmp.eq.s32.totalorder %s20, 0
      %p62 = por %p60, %p61
      %p63 = scmp.ne.s32.totalorder %s51, %s52
      %p64 = scmp.eq.s32.totalorder %s21, 1
      %p65 = por %p63, %p64
      %p67 = scmp.ne.s32.totalorder %s52, %s66
      %p68 = scmp.eq.s32.totalorder %s21, 0
      %p69 = por %p67, %p68
      %s71 = sadd.s32 %s70, 1
      %p74 = scmp.eq.s32.totalorder %s15, 1
      %p75 = scmp.ne.s32.totalorder %s70, %s72
      %p76 = scmp.eq.s32.totalorder %s15, 0
      %p77 = por %p75, %p76
      %p78 = scmp.ne.s32.totalorder %s70, %s72
      %p79 = scmp.eq.s32.totalorder %s20, 1
      %p80 = por %p78, %p79
      %p81 = scmp.ne.s32.totalorder %s72, %s73
      %p82 = scmp.eq.s32.totalorder %s20, 0
      %p83 = por %p81, %p82
      %p84 = scmp.ne.s32.totalorder %s72, %s73
      %p85 = scmp.eq.s32.totalorder %s21, 1
      %p86 = por %p84, %p85
      %p88 = scmp.ne.s32.totalorder %s73, %s87
      %p89 = scmp.eq.s32.totalorder %s21, 0
      %p90 = por %p88, %p89
      %s92 = sadd.s32 %s91, 1
      %p95 = scmp.eq.s32.totalorder %s15, 1
      %p96 = scmp.ne.s32.totalorder %s91, %s93
      %p97 = scmp.eq.s32.totalorder %s15, 0
      %p98 = por %p96, %p97
      %p99 = scmp.ne.s32.totalorder %s91, %s93
      %p100 = scmp.eq.s32.totalorder %s20, 1
      %p101 = por %p99, %p100
      %p102 = scmp.ne.s32.totalorder %s93, %s94
      %p103 = scmp.eq.s32.totalorder %s20, 0
      %p104 = por %p102, %p103
      %p105 = scmp.ne.s32.totalorder %s93, %s94
      %p106 = scmp.eq.s32.totalorder %s21, 1
      %p107 = por %p105, %p106
      %p109 = scmp.ne.s32.totalorder %s94, %s108
      %p110 = scmp.eq.s32.totalorder %s21, 0
      %p111 = por %p109, %p110
      %s113 = sadd.s32 %s112, 1
      %p116 = scmp.eq.s32.totalorder %s15, 1
      %p117 = scmp.ne.s32.totalorder %s112, %s114
      %p118 = scmp.eq.s32.totalorder %s15, 0
      %p119 = por %p117, %p118
      %p120 = scmp.ne.s32.totalorder %s112, %s114
      %p121 = scmp.eq.s32.totalorder %s20, 1
      %p122 = por %p120, %p121
      %p123 = scmp.ne.s32.totalorder %s114, %s115
      %p124 = scmp.eq.s32.totalorder %s20, 0
      %p125 = por %p123, %p124
      %p126 = scmp.ne.s32.totalorder %s114, %s115
      %p127 = scmp.eq.s32.totalorder %s21, 1
      %p128 = por %p126, %p127
      %p130 = scmp.ne.s32.totalorder %s115, %s129
      %p131 = scmp.eq.s32.totalorder %s21, 0
      %p132 = por %p130, %p131
      %s134 = sadd.s32 %s133, 1
      %p137 = scmp.eq.s32.totalorder %s15, 1
      %p138 = scmp.ne.s32.totalorder %s133, %s135
      %p139 = scmp.eq.s32.totalorder %s15, 0
      %p140 = por %p138, %p139
      %p141 = scmp.ne.s32.totalorder %s133, %s135
      %p142 = scmp.eq.s32.totalorder %s20, 1
      %p143 = por %p141, %p142
      %p144 = scmp.ne.s32.totalorder %s135, %s136
      %p145 = scmp.eq.s32.totalorder %s20, 0
      %p146 = por %p144, %p145
      %p147 = scmp.ne.s32.totalorder %s135, %s136
      %p148 = scmp.eq.s32.totalorder %s21, 1
      %p149 = por %p147, %p148
      %p151 = scmp.ne.s32.totalorder %s136, %s150
      %p152 = scmp.eq.s32.totalorder %s21, 0
      %p153 = por %p151, %p152
      %s154 = ssub.s32 %s15, %s22
      %p155 = scmp.eq.s32.totalorder %s154, 0
      %s157 = sadd.s32 %s156, 1
      %s158 = scalar_select %p155, %s156, %s157
      %p161 = pneg %p155
      %p162 = scmp.eq.s32.totalorder %s15, 1
      %p163 = por %p161, %p162
      %p164 = scmp.ne.s32.totalorder %s156, %s159
      %p165 = scmp.eq.s32.totalorder %s15, 0
      %p166 = por %p164, %p165
      %p167 = scmp.ne.s32.totalorder %s156, %s159
      %p168 = scmp.eq.s32.totalorder %s20, 1
      %p169 = por %p167, %p168
      %p170 = scmp.ne.s32.totalorder %s159, %s160
      %p171 = scmp.eq.s32.totalorder %s20, 0
      %p172 = por %p170, %p171
      %p173 = scmp.ne.s32.totalorder %s159, %s160
      %p174 = scmp.eq.s32.totalorder %s21, 1
      %p175 = por %p173, %p174
      %p177 = scmp.ne.s32.totalorder %s160, %s176
      %p178 = scmp.eq.s32.totalorder %s21, 0
      %p179 = por %p177, %p178
      %p180 = scmp.le.s32.totalorder 1, %s15
      %p181 = scmp.lt.s32.totalorder %s15, 3
      %p182 = pnand %p180, %p181
      %p183 = pneg %p182
      // Predicated region
      $region9: #{network_forward.1} parent=5 // pred_check
        _
      $region10: #{network_forward.1} parent=5 // pred_check_branch
        %185 = sbr.rel (%p182) target = $region12
      $region11: #{network_forward.1} parent=5 // pred_region
        %s186 = ssub.s32 %s15, 1
        // Predicated region
        $region13: #{network_forward.1} parent=11 // pred_check
          %p187 = pneg %p62
        $region14: #{network_forward.1} parent=11 // pred_check_branch
          %189 = sbr.rel (%p187) target = $region16
        $region15: #{network_forward.1} parent=11 // pred_region
          _
        $region16: #{network_forward.1} parent=11 // pred_fallthru
          _
        // Predicated region
        $region17: #{network_forward.1} parent=11 // pred_check
          %p190 = pneg %p83
        $region18: #{network_forward.1} parent=11 // pred_check_branch
          %192 = sbr.rel (%p190) target = $region20
        $region19: #{network_forward.1} parent=11 // pred_region
          _
        $region20: #{network_forward.1} parent=11 // pred_fallthru
          _
        // Predicated region
        $region21: #{network_forward.1} parent=11 // pred_check
          %p193 = pneg %p104
        $region22: #{network_forward.1} parent=11 // pred_check_branch
          %195 = sbr.rel (%p193) target = $region24
        $region23: #{network_forward.1} parent=11 // pred_region
          _
        $region24: #{network_forward.1} parent=11 // pred_fallthru
          _
        // Predicated region
        $region25: #{network_forward.1} parent=11 // pred_check
          %p196 = pneg %p125
        $region26: #{network_forward.1} parent=11 // pred_check_branch
          %198 = sbr.rel (%p196) target = $region28
        $region27: #{network_forward.1} parent=11 // pred_region
          _
        $region28: #{network_forward.1} parent=11 // pred_fallthru
          _
        // Predicated region
        $region29: #{network_forward.1} parent=11 // pred_check
          %p199 = pneg %p146
        $region30: #{network_forward.1} parent=11 // pred_check_branch
          %201 = sbr.rel (%p199) target = $region32
        $region31: #{network_forward.1} parent=11 // pred_region
          _
        $region32: #{network_forward.1} parent=11 // pred_fallthru
          _
      $region12: #{network_forward.1} parent=5 // pred_fallthru
        _
      %p202 = scmp.lt.s32.totalorder %s15, 2
      // Predicated region
      $region33: #{network_forward.1} parent=5 // pred_check
        %p203 = pneg %p202
      $region34: #{network_forward.1} parent=5 // pred_check_branch
        %205 = sbr.rel (%p203) target = $region36
      $region35: #{network_forward.1} parent=5 // pred_region
        // Predicated region
        $region37: #{network_forward.1} parent=35 // pred_check
          %p206 = pneg %p35
        $region38: #{network_forward.1} parent=35 // pred_check_branch
          %208 = sbr.rel (%p206) target = $region40
        $region39: #{network_forward.1} parent=35 // pred_region
          %p209 = scmp.lt.s32.totalorder %s15, 1
          %s210 = scalar_select %p209, %s15, 1
          %s211 = smul.addr %s210, 41
          %s212 = smul.addr %s211, 4
          %s213 = scalar_lea.vmem %s0, %s212
        $region40: #{network_forward.1} parent=35 // pred_fallthru
          _
      $region36: #{network_forward.1} parent=5 // pred_fallthru
        _
      %p214 = scmp.le.s32.totalorder 1, %s15
      %p215 = scmp.lt.s32.totalorder %s15, 3
      %p216 = pnand %p214, %p215
      %p217 = pneg %p216
      // Predicated region
      $region41: #{network_forward.1} parent=5 // pred_check
        _
      $region42: #{network_forward.1} parent=5 // pred_check_branch
        %219 = sbr.rel (%p216) target = $region44
      $region43: #{network_forward.1} parent=5 // pred_region
        %s220 = ssub.s32 %s15, 1
        %p221 = scmp.lt.s32.totalorder %s20, 1
        %s222 = scalar_select %p221, %s20, 1
        %s223 = smul.addr %s222, 41
        %s224 = smul.addr %s223, 4
        %s225 = scalar_lea.vmem %s0, %s224
        %p226 = pneg %p41
        %p227 = pneg %p38
        %p228 = pneg %p62
        %p229 = pneg %p59
        %p230 = pneg %p83
        %p231 = pneg %p80
        %p232 = pneg %p104
        %p233 = pneg %p101
        %p234 = pneg %p125
        %p235 = pneg %p122
        %p236 = pneg %p146
        %p237 = pneg %p143
        %p238 = pneg %p172
        %p239 = pneg %p169
        %s240 = sand.u32 %s159, 1
        %s241 = scalar_lea.sflag [#allocation3], %s240
        %s242 = sand.u32 %s159, 1
        %s243 = scalar_lea.vmem [#allocation2], %s242
        %p244 = scmp.lt.s32.totalorder %s20, 1
        %s245 = scalar_select %p244, %s20, 1
        %s246 = smul.addr %s245, 41
        %s247 = smul.addr %s246, 4
        %s248 = scalar_lea.vmem %s0, %s247
        %v250 = vld [vmem:[%s248] sm:$0xf]
        %v251 = vld [vmem:[%s248 + $0x4] sm:$0xf]
        %v252 = vld [vmem:[%s248 + $0x8] sm:$0xf]
        %v253 = vld [vmem:[%s248 + $0xc] sm:$0xf]
        %v254 = vld [vmem:[%s248 + $0x10] sm:$0xf]
        %v255 = vld [vmem:[%s248 + $0x14] sm:$0xf]
        %v256 = vld [vmem:[%s248 + $0x18] sm:$0xf]
        %v257 = vld [vmem:[%s248 + $0x1c] sm:$0xf]
        %v258 = vld [vmem:[%s248 + $0x20] sm:$0xf]
        %v259 = vld [vmem:[%s248 + $0x24] sm:$0xf]
        %v260 = vld [vmem:[%s248 + $0x28] sm:$0xf]
        %v261 = vld [vmem:[%s248 + $0x2c] sm:$0xf]
        %v262 = vld [vmem:[%s248 + $0x30] sm:$0xf]
        %v263 = vld [vmem:[%s248 + $0x34] sm:$0xf]
        %v264 = vld [vmem:[%s248 + $0x38] sm:$0xf]
        %v265 = vld [vmem:[%s248 + $0x3c] sm:$0xf]
        %v266 = vld [vmem:[%s248 + $0x40] sm:$0xf]
        %v267 = vld [vmem:[%s248 + $0x44] sm:$0xf]
        %v268 = vld [vmem:[%s248 + $0x48] sm:$0xf]
        %v269 = vld [vmem:[%s248 + $0x4c] sm:$0xf]
        %v270 = vld [vmem:[%s248 + $0x50] sm:$0xf]
        %v271 = vld [vmem:[%s248 + $0x54] sm:$0xf]
        %v272 = vld [vmem:[%s248 + $0x58] sm:$0xf]
        %v273 = vld [vmem:[%s248 + $0x5c] sm:$0xf]
        %v274 = vld [vmem:[%s248 + $0x60] sm:$0xf]
        %v275 = vld [vmem:[%s248 + $0x64] sm:$0xf]
        %v276 = vld [vmem:[%s248 + $0x68] sm:$0xf]
        %v277 = vld [vmem:[%s248 + $0x6c] sm:$0xf]
        %v278 = vld [vmem:[%s248 + $0x70] sm:$0xf]
        %v279 = vld [vmem:[%s248 + $0x74] sm:$0xf]
        %v280 = vld [vmem:[%s248 + $0x78] sm:$0xf]
        %v281 = vld [vmem:[%s248 + $0x7c] sm:$0xf]
        %v282 = vld [vmem:[%s248 + $0x80] sm:$0xf]
        %v283 = vld [vmem:[%s248 + $0x84] sm:$0xf]
        %v284 = vld [vmem:[%s248 + $0x88] sm:$0xf]
        %v285 = vld [vmem:[%s248 + $0x8c] sm:$0xf]
        %v286 = vld [vmem:[%s248 + $0x90] sm:$0xf]
        %v287 = vld [vmem:[%s248 + $0x94] sm:$0xf]
        %v288 = vld [vmem:[%s248 + $0x98] sm:$0xf]
        %v289 = vld [vmem:[%s248 + $0x9c] sm:$0xf]
        %v290 = vld [vmem:[%s248 + $0xa0] sm:$0xf]
        %v291 = vunpack.c.l.bf16 %v250
        %v292 = vunpack.c.l.bf16 %v251
        %v293 = vunpack.c.l.bf16 %v252
        %v294 = vunpack.c.l.bf16 %v253
        %v295 = vunpack.c.l.bf16 %v254
        %v296 = vunpack.c.l.bf16 %v255
        %v297 = vunpack.c.l.bf16 %v256
        %v298 = vunpack.c.l.bf16 %v257
        %v299 = vunpack.c.l.bf16 %v258
        %v300 = vunpack.c.l.bf16 %v259
        %v301 = vunpack.c.l.bf16 %v260
        %v302 = vunpack.c.l.bf16 %v261
        %v303 = vunpack.c.l.bf16 %v262
        %v304 = vunpack.c.l.bf16 %v263
        %v305 = vunpack.c.l.bf16 %v264
        %v306 = vunpack.c.l.bf16 %v265
        %v307 = vunpack.c.l.bf16 %v266
        %v308 = vunpack.c.l.bf16 %v267
        %v309 = vunpack.c.l.bf16 %v268
        %v310 = vunpack.c.l.bf16 %v269
        %v311 = vunpack.c.l.bf16 %v270
        %v312 = vunpack.c.l.bf16 %v271
        %v313 = vunpack.c.l.bf16 %v272
        %v314 = vunpack.c.l.bf16 %v273
        %v315 = vunpack.c.l.bf16 %v274
        %v316 = vunpack.c.l.bf16 %v275
        %v317 = vunpack.c.l.bf16 %v276
        %v318 = vunpack.c.l.bf16 %v277
        %v319 = vunpack.c.l.bf16 %v278
        %v320 = vunpack.c.l.bf16 %v279
        %v321 = vunpack.c.l.bf16 %v280
        %v322 = vunpack.c.l.bf16 %v281
        %v323 = vunpack.c.l.bf16 %v282
        %v324 = vunpack.c.l.bf16 %v283
        %v325 = vunpack.c.l.bf16 %v284
        %v326 = vunpack.c.l.bf16 %v285
        %v327 = vunpack.c.l.bf16 %v286
        %v328 = vunpack.c.l.bf16 %v287
        %v329 = vunpack.c.l.bf16 %v288
        %v330 = vunpack.c.l.bf16 %v289
        %v331 = vunpack.c.l.bf16 %v290
        %v332 = vld [vmem:[%s2] sm:$0x3]
        %v333 = vld [vmem:[%s2 + $0x2] sm:$0x3]
        %v334 = vld [vmem:[%s2 + $0x4] sm:$0x3]
        %v335 = vld [vmem:[%s2 + $0x6] sm:$0x3]
        %v336 = vld [vmem:[%s2 + $0x8] sm:$0x3]
        %v337 = vld [vmem:[%s2 + $0xa] sm:$0x3]
        %v338 = vld [vmem:[%s2 + $0xc] sm:$0x3]
        %v339 = vld [vmem:[%s2 + $0xe] sm:$0x3]
        %v340 = vld [vmem:[%s2 + $0x10] sm:$0x3]
        %v341 = vpack.c.bf16 %v292, %v291
        %v342 = vpack.c.bf16 %v294, %v293
        %v343 = vpack.c.bf16 %v296, %v295
        %v344 = vpack.c.bf16 %v298, %v297
        %v345 = vpack.c.bf16 %v300, %v299
        %v346 = vpack.c.bf16 %v302, %v301
        %v347 = vpack.c.bf16 %v304, %v303
        %v348 = vpack.c.bf16 %v306, %v305
        %v349 = vpack.c.bf16 %v308, %v307
        %v350 = vpack.c.bf16 %v310, %v309
        %v351 = vpack.c.bf16 %v312, %v311
        %v352 = vpack.c.bf16 %v314, %v313
        %v353 = vpack.c.bf16 %v316, %v315
        %v354 = vpack.c.bf16 %v318, %v317
        %v355 = vpack.c.bf16 %v320, %v319
        %v356 = vpack.c.bf16 %v322, %v321
        %v357 = vpack.c.bf16 %v324, %v323
        %v358 = vpack.c.bf16 %v326, %v325
        %v359 = vpack.c.bf16 %v327, %v327
        %vm360 = vsmask.f32 7424
        %v362 = vshrl.u32 %v341, 16
        %v364 = vshll.u32 %v341, 16
        %v366 = vrot.slane %v364, 1
        %v367 = vor.u32 %v362, %v366
        %v369 = vshll.u32 %v342, 16
        %v371 = vrot.slane %v369, 1
        %v372 = vsel %vm360, %v367, %v371
        %v373 = vshrl.u32 %v342, 16
        %v375 = vor.u32 %v373, %v371
        %v377 = vshll.u32 %v343, 16
        %v379 = vrot.slane %v377, 1
        %v380 = vsel %vm360, %v375, %v379
        %v381 = vshrl.u32 %v343, 16
        %v383 = vor.u32 %v381, %v379
        %v385 = vshll.u32 %v344, 16
        %v387 = vrot.slane %v385, 1
        %v388 = vsel %vm360, %v383, %v387
        %v389 = vshrl.u32 %v344, 16
        %v391 = vor.u32 %v389, %v387
        %v393 = vshll.u32 %v345, 16
        %v395 = vrot.slane %v393, 1
        %v396 = vsel %vm360, %v391, %v395
        %v397 = vshrl.u32 %v345, 16
        %v399 = vor.u32 %v397, %v395
        %v401 = vshll.u32 %v346, 16
        %v403 = vrot.slane %v401, 1
        %v404 = vsel %vm360, %v399, %v403
        %v405 = vshrl.u32 %v346, 16
        %v407 = vor.u32 %v405, %v403
        %v409 = vshll.u32 %v347, 16
        %v411 = vrot.slane %v409, 1
        %v412 = vsel %vm360, %v407, %v411
        %v413 = vshrl.u32 %v347, 16
        %v415 = vor.u32 %v413, %v411
        %v417 = vshll.u32 %v348, 16
        %v419 = vrot.slane %v417, 1
        %v420 = vsel %vm360, %v415, %v419
        %v421 = vshrl.u32 %v348, 16
        %v423 = vor.u32 %v421, %v419
        %v425 = vshll.u32 %v349, 16
        %v427 = vrot.slane %v425, 1
        %v428 = vsel %vm360, %v423, %v427
        %v429 = vshrl.u32 %v349, 16
        %v431 = vor.u32 %v429, %v427
        %v433 = vshll.u32 %v350, 16
        %v435 = vrot.slane %v433, 1
        %v436 = vsel %vm360, %v431, %v435
        %v437 = vshrl.u32 %v350, 16
        %v439 = vor.u32 %v437, %v435
        %v441 = vshll.u32 %v351, 16
        %v443 = vrot.slane %v441, 1
        %v444 = vsel %vm360, %v439, %v443
        %v445 = vshrl.u32 %v351, 16
        %v447 = vor.u32 %v445, %v443
        %v449 = vshll.u32 %v352, 16
        %v451 = vrot.slane %v449, 1
        %v452 = vsel %vm360, %v447, %v451
        %v453 = vshrl.u32 %v352, 16
        %v455 = vor.u32 %v453, %v451
        %v457 = vshll.u32 %v353, 16
        %v459 = vrot.slane %v457, 1
        %v460 = vsel %vm360, %v455, %v459
        %v461 = vshrl.u32 %v353, 16
        %v463 = vor.u32 %v461, %v459
        %v465 = vshll.u32 %v354, 16
        %v467 = vrot.slane %v465, 1
        %v468 = vsel %vm360, %v463, %v467
        %v469 = vshrl.u32 %v354, 16
        %v471 = vor.u32 %v469, %v467
        %v473 = vshll.u32 %v355, 16
        %v475 = vrot.slane %v473, 1
        %v476 = vsel %vm360, %v471, %v475
        %v477 = vshrl.u32 %v355, 16
        %v479 = vor.u32 %v477, %v475
        %v481 = vshll.u32 %v356, 16
        %v483 = vrot.slane %v481, 1
        %v484 = vsel %vm360, %v479, %v483
        %v485 = vshrl.u32 %v356, 16
        %v487 = vor.u32 %v485, %v483
        %v489 = vshll.u32 %v357, 16
        %v491 = vrot.slane %v489, 1
        %v492 = vsel %vm360, %v487, %v491
        %v493 = vshrl.u32 %v357, 16
        %v495 = vor.u32 %v493, %v491
        %v497 = vshll.u32 %v358, 16
        %v499 = vrot.slane %v497, 1
        %v500 = vsel %vm360, %v495, %v499
        %v501 = vshrl.u32 %v358, 16
        %v503 = vor.u32 %v501, %v499
        %v505 = vshll.u32 %v359, 16
        %v507 = vrot.slane %v505, 1
        %v508 = vsel %vm360, %v503, %v507
        %vm509 = vcmask 31744
        %v511 = vsel %vm509, %v372, 0
        %v514 = vsel %vm509, %v380, 0
        %v517 = vsel %vm509, %v388, 0
        %v520 = vsel %vm509, %v396, 0
        %v523 = vsel %vm509, %v404, 0
        %v526 = vsel %vm509, %v412, 0
        %v529 = vsel %vm509, %v420, 0
        %v532 = vsel %vm509, %v428, 0
        %v535 = vsel %vm509, %v436, 0
        %v538 = vsel %vm509, %v444, 0
        %v541 = vsel %vm509, %v452, 0
        %v544 = vsel %vm509, %v460, 0
        %v547 = vsel %vm509, %v468, 0
        %v550 = vsel %vm509, %v476, 0
        %v553 = vsel %vm509, %v484, 0
        %v556 = vsel %vm509, %v492, 0
        %v559 = vsel %vm509, %v500, 0
        %v562 = vsel %vm509, %v508, 0
        %vm564 = vcmask 1041408
        %v566 = vsel %vm564, %v333, 0
        %568 = vmatpush.bf16.msra.mxu0 0
        %569 = vmatpush.bf16.msra.mxu0 0
        %570 = vmatpush.bf16.msra.mxu0 0
        %571 = vmatpush.bf16.msra.mxu0 0
        %572 = vmatpush.bf16.msra.mxu0 0
        %573 = vmatpush.bf16.msra.mxu0 0
        %574 = vmatpush.bf16.msra.mxu0 0
        %575 = vmatpush.bf16.msra.mxu0 %v566
        %576 = vmatmul.bf16.gmra.mxu0 %v511
        %v577 = vpop.f32.mrf.mxu0
        %v578 = vadd.f32 0.0, %v577
        %v579 = vpop.f32.mrf.mxu0
        %v580 = vadd.f32 0.0, %v579
        %581 = vmatmul.bf16.gmra.mxu0 %v514
        %v582 = vpop.f32.mrf.mxu0
        %v583 = vadd.f32 0.0, %v582
        %v584 = vpop.f32.mrf.mxu0
        %v585 = vadd.f32 0.0, %v584
        %586 = vmatmul.bf16.gmra.mxu0 %v517
        %v587 = vpop.f32.mrf.mxu0
        %v588 = vadd.f32 0.0, %v587
        %v589 = vpop.f32.mrf.mxu0
        %v590 = vadd.f32 0.0, %v589
        %591 = vmatmul.bf16.gmra.mxu0 %v520
        %v592 = vpop.f32.mrf.mxu0
        %v593 = vadd.f32 0.0, %v592
        %v594 = vpop.f32.mrf.mxu0
        %v595 = vadd.f32 0.0, %v594
        %596 = vmatmul.bf16.gmra.mxu0 %v523
        %v597 = vpop.f32.mrf.mxu0
        %v598 = vadd.f32 0.0, %v597
        %v599 = vpop.f32.mrf.mxu0
        %v600 = vadd.f32 0.0, %v599
        %601 = vmatmul.bf16.gmra.mxu0 %v526
        %v602 = vpop.f32.mrf.mxu0
        %v603 = vadd.f32 0.0, %v602
        %v604 = vpop.f32.mrf.mxu0
        %v605 = vadd.f32 0.0, %v604
        %606 = vmatmul.bf16.gmra.mxu0 %v529
        %v607 = vpop.f32.mrf.mxu0
        %v608 = vadd.f32 0.0, %v607
        %v609 = vpop.f32.mrf.mxu0
        %v610 = vadd.f32 0.0, %v609
        %611 = vmatmul.bf16.gmra.mxu0 %v532
        %v612 = vpop.f32.mrf.mxu0
        %v613 = vadd.f32 0.0, %v612
        %v614 = vpop.f32.mrf.mxu0
        %v615 = vadd.f32 0.0, %v614
        %616 = vmatmul.bf16.gmra.mxu0 %v535
        %v617 = vpop.f32.mrf.mxu0
        %v618 = vadd.f32 0.0, %v617
        %v619 = vpop.f32.mrf.mxu0
        %v620 = vadd.f32 0.0, %v619
        %621 = vmatmul.bf16.gmra.mxu0 %v538
        %v622 = vpop.f32.mrf.mxu0
        %v623 = vadd.f32 0.0, %v622
        %v624 = vpop.f32.mrf.mxu0
        %v625 = vadd.f32 0.0, %v624
        %626 = vmatmul.bf16.gmra.mxu0 %v541
        %v627 = vpop.f32.mrf.mxu0
        %v628 = vadd.f32 0.0, %v627
        %v629 = vpop.f32.mrf.mxu0
        %v630 = vadd.f32 0.0, %v629
        %631 = vmatmul.bf16.gmra.mxu0 %v544
        %v632 = vpop.f32.mrf.mxu0
        %v633 = vadd.f32 0.0, %v632
        %v634 = vpop.f32.mrf.mxu0
        %v635 = vadd.f32 0.0, %v634
        %636 = vmatmul.bf16.gmra.mxu0 %v547
        %v637 = vpop.f32.mrf.mxu0
        %v638 = vadd.f32 0.0, %v637
        %v639 = vpop.f32.mrf.mxu0
        %v640 = vadd.f32 0.0, %v639
        %641 = vmatmul.bf16.gmra.mxu0 %v550
        %v642 = vpop.f32.mrf.mxu0
        %v643 = vadd.f32 0.0, %v642
        %v644 = vpop.f32.mrf.mxu0
        %v645 = vadd.f32 0.0, %v644
        %646 = vmatmul.bf16.gmra.mxu0 %v553
        %v647 = vpop.f32.mrf.mxu0
        %v648 = vadd.f32 0.0, %v647
        %v649 = vpop.f32.mrf.mxu0
        %v650 = vadd.f32 0.0, %v649
        %651 = vmatmul.bf16.gmra.mxu0 %v556
        %v652 = vpop.f32.mrf.mxu0
        %v653 = vadd.f32 0.0, %v652
        %v654 = vpop.f32.mrf.mxu0
        %v655 = vadd.f32 0.0, %v654
        %656 = vmatmul.bf16.gmra.mxu0 %v559
        %v657 = vpop.f32.mrf.mxu0
        %v658 = vadd.f32 0.0, %v657
        %v659 = vpop.f32.mrf.mxu0
        %v660 = vadd.f32 0.0, %v659
        %661 = vmatmul.bf16.gmra.mxu0 %v562
        %v662 = vpop.f32.mrf.mxu0
        %v663 = vadd.f32 0.0, %v662
        %v664 = vpop.f32.mrf.mxu0
        %v665 = vadd.f32 0.0, %v664
        %666 = vdwg.mxu0
        %v667 = vsel %vm509, %v341, 0
        %v669 = vsel %vm509, %v342, 0
        %v671 = vsel %vm509, %v343, 0
        %v673 = vsel %vm509, %v344, 0
        %v675 = vsel %vm509, %v345, 0
        %v677 = vsel %vm509, %v346, 0
        %v679 = vsel %vm509, %v347, 0
        %v681 = vsel %vm509, %v348, 0
        %v683 = vsel %vm509, %v349, 0
        %v685 = vsel %vm509, %v350, 0
        %v687 = vsel %vm509, %v351, 0
        %v689 = vsel %vm509, %v352, 0
        %v691 = vsel %vm509, %v353, 0
        %v693 = vsel %vm509, %v354, 0
        %v695 = vsel %vm509, %v355, 0
        %v697 = vsel %vm509, %v356, 0
        %v699 = vsel %vm509, %v357, 0
        %v701 = vsel %vm509, %v358, 0
        %v704 = vsel %vm564, %v332, 0
        %706 = vmatpush.bf16.msra.mxu0 0
        %707 = vmatpush.bf16.msra.mxu0 0
        %708 = vmatpush.bf16.msra.mxu0 0
        %709 = vmatpush.bf16.msra.mxu0 0
        %710 = vmatpush.bf16.msra.mxu0 0
        %711 = vmatpush.bf16.msra.mxu0 0
        %712 = vmatpush.bf16.msra.mxu0 0
        %713 = vmatpush.bf16.msra.mxu0 %v704
        %714 = vmatmul.bf16.gmra.mxu0 %v667
        %v715 = vpop.f32.mrf.mxu0
        %v716 = vadd.f32 %v578, %v715
        %v717 = vpop.f32.mrf.mxu0
        %v718 = vadd.f32 %v580, %v717
        %719 = vmatmul.bf16.gmra.mxu0 %v669
        %v720 = vpop.f32.mrf.mxu0
        %v721 = vadd.f32 %v583, %v720
        %v722 = vpop.f32.mrf.mxu0
        %v723 = vadd.f32 %v585, %v722
        %724 = vmatmul.bf16.gmra.mxu0 %v671
        %v725 = vpop.f32.mrf.mxu0
        %v726 = vadd.f32 %v588, %v725
        %v727 = vpop.f32.mrf.mxu0
        %v728 = vadd.f32 %v590, %v727
        %729 = vmatmul.bf16.gmra.mxu0 %v673
        %v730 = vpop.f32.mrf.mxu0
        %v731 = vadd.f32 %v593, %v730
        %v732 = vpop.f32.mrf.mxu0
        %v733 = vadd.f32 %v595, %v732
        %734 = vmatmul.bf16.gmra.mxu0 %v675
        %v735 = vpop.f32.mrf.mxu0
        %v736 = vadd.f32 %v598, %v735
        %v737 = vpop.f32.mrf.mxu0
        %v738 = vadd.f32 %v600, %v737
        %739 = vmatmul.bf16.gmra.mxu0 %v677
        %v740 = vpop.f32.mrf.mxu0
        %v741 = vadd.f32 %v603, %v740
        %v742 = vpop.f32.mrf.mxu0
        %v743 = vadd.f32 %v605, %v742
        %744 = vmatmul.bf16.gmra.mxu0 %v679
        %v745 = vpop.f32.mrf.mxu0
        %v746 = vadd.f32 %v608, %v745
        %v747 = vpop.f32.mrf.mxu0
        %v748 = vadd.f32 %v610, %v747
        %749 = vmatmul.bf16.gmra.mxu0 %v681
        %v750 = vpop.f32.mrf.mxu0
        %v751 = vadd.f32 %v613, %v750
        %v752 = vpop.f32.mrf.mxu0
        %v753 = vadd.f32 %v615, %v752
        %754 = vmatmul.bf16.gmra.mxu0 %v683
        %v755 = vpop.f32.mrf.mxu0
        %v756 = vadd.f32 %v618, %v755
        %v757 = vpop.f32.mrf.mxu0
        %v758 = vadd.f32 %v620, %v757
        %759 = vmatmul.bf16.gmra.mxu0 %v685
        %v760 = vpop.f32.mrf.mxu0
        %v761 = vadd.f32 %v623, %v760
        %v762 = vpop.f32.mrf.mxu0
        %v763 = vadd.f32 %v625, %v762
        %764 = vmatmul.bf16.gmra.mxu0 %v687
        %v765 = vpop.f32.mrf.mxu0
        %v766 = vadd.f32 %v628, %v765
        %v767 = vpop.f32.mrf.mxu0
        %v768 = vadd.f32 %v630, %v767
        %769 = vmatmul.bf16.gmra.mxu0 %v689
        %v770 = vpop.f32.mrf.mxu0
        %v771 = vadd.f32 %v633, %v770
        %v772 = vpop.f32.mrf.mxu0
        %v773 = vadd.f32 %v635, %v772
        %774 = vmatmul.bf16.gmra.mxu0 %v691
        %v775 = vpop.f32.mrf.mxu0
        %v776 = vadd.f32 %v638, %v775
        %v777 = vpop.f32.mrf.mxu0
        %v778 = vadd.f32 %v640, %v777
        %779 = vmatmul.bf16.gmra.mxu0 %v693
        %v780 = vpop.f32.mrf.mxu0
        %v781 = vadd.f32 %v643, %v780
        %v782 = vpop.f32.mrf.mxu0
        %v783 = vadd.f32 %v645, %v782
        %784 = vmatmul.bf16.gmra.mxu0 %v695
        %v785 = vpop.f32.mrf.mxu0
        %v786 = vadd.f32 %v648, %v785
        %v787 = vpop.f32.mrf.mxu0
        %v788 = vadd.f32 %v650, %v787
        %789 = vmatmul.bf16.gmra.mxu0 %v697
        %v790 = vpop.f32.mrf.mxu0
        %v791 = vadd.f32 %v653, %v790
        %v792 = vpop.f32.mrf.mxu0
        %v793 = vadd.f32 %v655, %v792
        %794 = vmatmul.bf16.gmra.mxu0 %v699
        %v795 = vpop.f32.mrf.mxu0
        %v796 = vadd.f32 %v658, %v795
        %v797 = vpop.f32.mrf.mxu0
        %v798 = vadd.f32 %v660, %v797
        %799 = vmatmul.bf16.gmra.mxu0 %v701
        %v800 = vpop.f32.mrf.mxu0
        %v801 = vadd.f32 %v663, %v800
        %v802 = vpop.f32.mrf.mxu0
        %v803 = vadd.f32 %v665, %v802
        %804 = vdwg.mxu0
        %vm824 = vcmask 1046528
        %v825 = vrot.slane %v341, 1
        %v826 = vrot.slane %v342, 1
        %v827 = vsel %vm824, %v825, %v826
        %v828 = vrot.slane %v343, 1
        %v829 = vsel %vm824, %v826, %v828
        %v830 = vrot.slane %v344, 1
        %v831 = vsel %vm824, %v828, %v830
        %v832 = vrot.slane %v345, 1
        %v833 = vsel %vm824, %v830, %v832
        %v834 = vrot.slane %v346, 1
        %v835 = vsel %vm824, %v832, %v834
        %v836 = vrot.slane %v347, 1
        %v837 = vsel %vm824, %v834, %v836
        %v838 = vrot.slane %v348, 1
        %v839 = vsel %vm824, %v836, %v838
        %v840 = vrot.slane %v349, 1
        %v841 = vsel %vm824, %v838, %v840
        %v842 = vrot.slane %v350, 1
        %v843 = vsel %vm824, %v840, %v842
        %v844 = vrot.slane %v351, 1
        %v845 = vsel %vm824, %v842, %v844
        %v846 = vrot.slane %v352, 1
        %v847 = vsel %vm824, %v844, %v846
        %v848 = vrot.slane %v353, 1
        %v849 = vsel %vm824, %v846, %v848
        %v850 = vrot.slane %v354, 1
        %v851 = vsel %vm824, %v848, %v850
        %v852 = vrot.slane %v355, 1
        %v853 = vsel %vm824, %v850, %v852
        %v854 = vrot.slane %v356, 1
        %v855 = vsel %vm824, %v852, %v854
        %v856 = vrot.slane %v357, 1
        %v857 = vsel %vm824, %v854, %v856
        %v858 = vrot.slane %v358, 1
        %v859 = vsel %vm824, %v856, %v858
        %v860 = vrot.slane %v359, 1
        %v861 = vsel %vm824, %v858, %v860
        %v863 = vsel %vm509, %v827, 0
        %v866 = vsel %vm509, %v829, 0
        %v869 = vsel %vm509, %v831, 0
        %v872 = vsel %vm509, %v833, 0
        %v875 = vsel %vm509, %v835, 0
        %v878 = vsel %vm509, %v837, 0
        %v881 = vsel %vm509, %v839, 0
        %v884 = vsel %vm509, %v841, 0
        %v887 = vsel %vm509, %v843, 0
        %v890 = vsel %vm509, %v845, 0
        %v893 = vsel %vm509, %v847, 0
        %v896 = vsel %vm509, %v849, 0
        %v899 = vsel %vm509, %v851, 0
        %v902 = vsel %vm509, %v853, 0
        %v905 = vsel %vm509, %v855, 0
        %v908 = vsel %vm509, %v857, 0
        %v911 = vsel %vm509, %v859, 0
        %v914 = vsel %vm509, %v861, 0
        %v917 = vsel %vm564, %v334, 0
        %919 = vmatpush.bf16.msra.mxu0 0
        %920 = vmatpush.bf16.msra.mxu0 0
        %921 = vmatpush.bf16.msra.mxu0 0
        %922 = vmatpush.bf16.msra.mxu0 0
        %923 = vmatpush.bf16.msra.mxu0 0
        %924 = vmatpush.bf16.msra.mxu0 0
        %925 = vmatpush.bf16.msra.mxu0 0
        %926 = vmatpush.bf16.msra.mxu0 %v917
        %927 = vmatmul.bf16.gmra.mxu0 %v863
        %v928 = vpop.f32.mrf.mxu0
        %v929 = vadd.f32 0.0, %v928
        %v930 = vpop.f32.mrf.mxu0
        %v931 = vadd.f32 0.0, %v930
        %932 = vmatmul.bf16.gmra.mxu0 %v866
        %v933 = vpop.f32.mrf.mxu0
        %v934 = vadd.f32 0.0, %v933
        %v935 = vpop.f32.mrf.mxu0
        %v936 = vadd.f32 0.0, %v935
        %937 = vmatmul.bf16.gmra.mxu0 %v869
        %v938 = vpop.f32.mrf.mxu0
        %v939 = vadd.f32 0.0, %v938
        %v940 = vpop.f32.mrf.mxu0
        %v941 = vadd.f32 0.0, %v940
        %942 = vmatmul.bf16.gmra.mxu0 %v872
        %v943 = vpop.f32.mrf.mxu0
        %v944 = vadd.f32 0.0, %v943
        %v945 = vpop.f32.mrf.mxu0
        %v946 = vadd.f32 0.0, %v945
        %947 = vmatmul.bf16.gmra.mxu0 %v875
        %v948 = vpop.f32.mrf.mxu0
        %v949 = vadd.f32 0.0, %v948
        %v950 = vpop.f32.mrf.mxu0
        %v951 = vadd.f32 0.0, %v950
        %952 = vmatmul.bf16.gmra.mxu0 %v878
        %v953 = vpop.f32.mrf.mxu0
        %v954 = vadd.f32 0.0, %v953
        %v955 = vpop.f32.mrf.mxu0
        %v956 = vadd.f32 0.0, %v955
        %957 = vmatmul.bf16.gmra.mxu0 %v881
        %v958 = vpop.f32.mrf.mxu0
        %v959 = vadd.f32 0.0, %v958
        %v960 = vpop.f32.mrf.mxu0
        %v961 = vadd.f32 0.0, %v960
        %962 = vmatmul.bf16.gmra.mxu0 %v884
        %v963 = vpop.f32.mrf.mxu0
        %v964 = vadd.f32 0.0, %v963
        %v965 = vpop.f32.mrf.mxu0
        %v966 = vadd.f32 0.0, %v965
        %967 = vmatmul.bf16.gmra.mxu0 %v887
        %v968 = vpop.f32.mrf.mxu0
        %v969 = vadd.f32 0.0, %v968
        %v970 = vpop.f32.mrf.mxu0
        %v971 = vadd.f32 0.0, %v970
        %972 = vmatmul.bf16.gmra.mxu0 %v890
        %v973 = vpop.f32.mrf.mxu0
        %v974 = vadd.f32 0.0, %v973
        %v975 = vpop.f32.mrf.mxu0
        %v976 = vadd.f32 0.0, %v975
        %977 = vmatmul.bf16.gmra.mxu0 %v893
        %v978 = vpop.f32.mrf.mxu0
        %v979 = vadd.f32 0.0, %v978
        %v980 = vpop.f32.mrf.mxu0
        %v981 = vadd.f32 0.0, %v980
        %982 = vmatmul.bf16.gmra.mxu0 %v896
        %v983 = vpop.f32.mrf.mxu0
        %v984 = vadd.f32 0.0, %v983
        %v985 = vpop.f32.mrf.mxu0
        %v986 = vadd.f32 0.0, %v985
        %987 = vmatmul.bf16.gmra.mxu0 %v899
        %v988 = vpop.f32.mrf.mxu0
        %v989 = vadd.f32 0.0, %v988
        %v990 = vpop.f32.mrf.mxu0
        %v991 = vadd.f32 0.0, %v990
        %992 = vmatmul.bf16.gmra.mxu0 %v902
        %v993 = vpop.f32.mrf.mxu0
        %v994 = vadd.f32 0.0, %v993
        %v995 = vpop.f32.mrf.mxu0
        %v996 = vadd.f32 0.0, %v995
        %997 = vmatmul.bf16.gmra.mxu0 %v905
        %v998 = vpop.f32.mrf.mxu0
        %v999 = vadd.f32 0.0, %v998
        %v1000 = vpop.f32.mrf.mxu0
        %v1001 = vadd.f32 0.0, %v1000
        %1002 = vmatmul.bf16.gmra.mxu0 %v908
        %v1003 = vpop.f32.mrf.mxu0
        %v1004 = vadd.f32 0.0, %v1003
        %v1005 = vpop.f32.mrf.mxu0
        %v1006 = vadd.f32 0.0, %v1005
        %1007 = vmatmul.bf16.gmra.mxu0 %v911
        %v1008 = vpop.f32.mrf.mxu0
        %v1009 = vadd.f32 0.0, %v1008
        %v1010 = vpop.f32.mrf.mxu0
        %v1011 = vadd.f32 0.0, %v1010
        %1012 = vmatmul.bf16.gmra.mxu0 %v914
        %v1013 = vpop.f32.mrf.mxu0
        %v1014 = vadd.f32 0.0, %v1013
        %v1015 = vpop.f32.mrf.mxu0
        %v1016 = vadd.f32 0.0, %v1015
        %1017 = vdwg.mxu0
        %v1018 = vadd.f32 %v716, %v929
        %v1019 = vadd.f32 %v718, %v931
        %v1020 = vadd.f32 %v721, %v934
        %v1021 = vadd.f32 %v723, %v936
        %v1022 = vadd.f32 %v726, %v939
        %v1023 = vadd.f32 %v728, %v941
        %v1024 = vadd.f32 %v731, %v944
        %v1025 = vadd.f32 %v733, %v946
        %v1026 = vadd.f32 %v736, %v949
        %v1027 = vadd.f32 %v738, %v951
        %v1028 = vadd.f32 %v741, %v954
        %v1029 = vadd.f32 %v743, %v956
        %v1030 = vadd.f32 %v746, %v959
        %v1031 = vadd.f32 %v748, %v961
        %v1032 = vadd.f32 %v751, %v964
        %v1033 = vadd.f32 %v753, %v966
        %v1034 = vadd.f32 %v756, %v969
        %v1035 = vadd.f32 %v758, %v971
        %v1036 = vadd.f32 %v761, %v974
        %v1037 = vadd.f32 %v763, %v976
        %v1038 = vadd.f32 %v766, %v979
        %v1039 = vadd.f32 %v768, %v981
        %v1040 = vadd.f32 %v771, %v984
        %v1041 = vadd.f32 %v773, %v986
        %v1042 = vadd.f32 %v776, %v989
        %v1043 = vadd.f32 %v778, %v991
        %v1044 = vadd.f32 %v781, %v994
        %v1045 = vadd.f32 %v783, %v996
        %v1046 = vadd.f32 %v786, %v999
        %v1047 = vadd.f32 %v788, %v1001
        %v1048 = vadd.f32 %v791, %v1004
        %v1049 = vadd.f32 %v793, %v1006
        %v1050 = vadd.f32 %v796, %v1009
        %v1051 = vadd.f32 %v798, %v1011
        %v1052 = vadd.f32 %v801, %v1014
        %v1053 = vadd.f32 %v803, %v1016
        %v1054 = vpack.c.bf16 %v328, %v327
        %v1055 = vpack.c.bf16 %v329, %v329
        %v1058 = vrot.slane %v1054, 1
        %v1059 = vsel %vm824, %v858, %v1058
        %v1060 = vrot.slane %v1055, 1
        %v1061 = vsel %vm824, %v1058, %v1060
        %v1063 = vsel %vm509, %v1059, 0
        %v1066 = vsel %vm509, %v1061, 0
        %v1069 = vsel %vm564, %v335, 0
        %1071 = vmatpush.bf16.msra.mxu0 0
        %1072 = vmatpush.bf16.msra.mxu0 0
        %1073 = vmatpush.bf16.msra.mxu0 0
        %1074 = vmatpush.bf16.msra.mxu0 0
        %1075 = vmatpush.bf16.msra.mxu0 0
        %1076 = vmatpush.bf16.msra.mxu0 0
        %1077 = vmatpush.bf16.msra.mxu0 0
        %1078 = vmatpush.bf16.msra.mxu0 %v1069
        %1079 = vmatmul.bf16.gmra.mxu0 %v866
        %v1080 = vpop.f32.mrf.mxu0
        %v1081 = vadd.f32 0.0, %v1080
        %v1082 = vpop.f32.mrf.mxu0
        %v1083 = vadd.f32 0.0, %v1082
        %1084 = vmatmul.bf16.gmra.mxu0 %v869
        %v1085 = vpop.f32.mrf.mxu0
        %v1086 = vadd.f32 0.0, %v1085
        %v1087 = vpop.f32.mrf.mxu0
        %v1088 = vadd.f32 0.0, %v1087
        %1089 = vmatmul.bf16.gmra.mxu0 %v872
        %v1090 = vpop.f32.mrf.mxu0
        %v1091 = vadd.f32 0.0, %v1090
        %v1092 = vpop.f32.mrf.mxu0
        %v1093 = vadd.f32 0.0, %v1092
        %1094 = vmatmul.bf16.gmra.mxu0 %v875
        %v1095 = vpop.f32.mrf.mxu0
        %v1096 = vadd.f32 0.0, %v1095
        %v1097 = vpop.f32.mrf.mxu0
        %v1098 = vadd.f32 0.0, %v1097
        %1099 = vmatmul.bf16.gmra.mxu0 %v878
        %v1100 = vpop.f32.mrf.mxu0
        %v1101 = vadd.f32 0.0, %v1100
        %v1102 = vpop.f32.mrf.mxu0
        %v1103 = vadd.f32 0.0, %v1102
        %1104 = vmatmul.bf16.gmra.mxu0 %v881
        %v1105 = vpop.f32.mrf.mxu0
        %v1106 = vadd.f32 0.0, %v1105
        %v1107 = vpop.f32.mrf.mxu0
        %v1108 = vadd.f32 0.0, %v1107
        %1109 = vmatmul.bf16.gmra.mxu0 %v884
        %v1110 = vpop.f32.mrf.mxu0
        %v1111 = vadd.f32 0.0, %v1110
        %v1112 = vpop.f32.mrf.mxu0
        %v1113 = vadd.f32 0.0, %v1112
        %1114 = vmatmul.bf16.gmra.mxu0 %v887
        %v1115 = vpop.f32.mrf.mxu0
        %v1116 = vadd.f32 0.0, %v1115
        %v1117 = vpop.f32.mrf.mxu0
        %v1118 = vadd.f32 0.0, %v1117
        %1119 = vmatmul.bf16.gmra.mxu0 %v890
        %v1120 = vpop.f32.mrf.mxu0
        %v1121 = vadd.f32 0.0, %v1120
        %v1122 = vpop.f32.mrf.mxu0
        %v1123 = vadd.f32 0.0, %v1122
        %1124 = vmatmul.bf16.gmra.mxu0 %v893
        %v1125 = vpop.f32.mrf.mxu0
        %v1126 = vadd.f32 0.0, %v1125
        %v1127 = vpop.f32.mrf.mxu0
        %v1128 = vadd.f32 0.0, %v1127
        %1129 = vmatmul.bf16.gmra.mxu0 %v896
        %v1130 = vpop.f32.mrf.mxu0
        %v1131 = vadd.f32 0.0, %v1130
        %v1132 = vpop.f32.mrf.mxu0
        %v1133 = vadd.f32 0.0, %v1132
        %1134 = vmatmul.bf16.gmra.mxu0 %v899
        %v1135 = vpop.f32.mrf.mxu0
        %v1136 = vadd.f32 0.0, %v1135
        %v1137 = vpop.f32.mrf.mxu0
        %v1138 = vadd.f32 0.0, %v1137
        %1139 = vmatmul.bf16.gmra.mxu0 %v902
        %v1140 = vpop.f32.mrf.mxu0
        %v1141 = vadd.f32 0.0, %v1140
        %v1142 = vpop.f32.mrf.mxu0
        %v1143 = vadd.f32 0.0, %v1142
        %1144 = vmatmul.bf16.gmra.mxu0 %v905
        %v1145 = vpop.f32.mrf.mxu0
        %v1146 = vadd.f32 0.0, %v1145
        %v1147 = vpop.f32.mrf.mxu0
        %v1148 = vadd.f32 0.0, %v1147
        %1149 = vmatmul.bf16.gmra.mxu0 %v908
        %v1150 = vpop.f32.mrf.mxu0
        %v1151 = vadd.f32 0.0, %v1150
        %v1152 = vpop.f32.mrf.mxu0
        %v1153 = vadd.f32 0.0, %v1152
        %1154 = vmatmul.bf16.gmra.mxu0 %v911
        %v1155 = vpop.f32.mrf.mxu0
        %v1156 = vadd.f32 0.0, %v1155
        %v1157 = vpop.f32.mrf.mxu0
        %v1158 = vadd.f32 0.0, %v1157
        %1159 = vmatmul.bf16.gmra.mxu0 %v1063
        %v1160 = vpop.f32.mrf.mxu0
        %v1161 = vadd.f32 0.0, %v1160
        %v1162 = vpop.f32.mrf.mxu0
        %v1163 = vadd.f32 0.0, %v1162
        %1164 = vmatmul.bf16.gmra.mxu0 %v1066
        %v1165 = vpop.f32.mrf.mxu0
        %v1166 = vadd.f32 0.0, %v1165
        %v1167 = vpop.f32.mrf.mxu0
        %v1168 = vadd.f32 0.0, %v1167
        %1169 = vdwg.mxu0
        %v1170 = vadd.f32 %v1018, %v1081
        %v1171 = vadd.f32 %v1019, %v1083
        %v1172 = vadd.f32 %v1020, %v1086
        %v1173 = vadd.f32 %v1021, %v1088
        %v1174 = vadd.f32 %v1022, %v1091
        %v1175 = vadd.f32 %v1023, %v1093
        %v1176 = vadd.f32 %v1024, %v1096
        %v1177 = vadd.f32 %v1025, %v1098
        %v1178 = vadd.f32 %v1026, %v1101
        %v1179 = vadd.f32 %v1027, %v1103
        %v1180 = vadd.f32 %v1028, %v1106
        %v1181 = vadd.f32 %v1029, %v1108
        %v1182 = vadd.f32 %v1030, %v1111
        %v1183 = vadd.f32 %v1031, %v1113
        %v1184 = vadd.f32 %v1032, %v1116
        %v1185 = vadd.f32 %v1033, %v1118
        %v1186 = vadd.f32 %v1034, %v1121
        %v1187 = vadd.f32 %v1035, %v1123
        %v1188 = vadd.f32 %v1036, %v1126
        %v1189 = vadd.f32 %v1037, %v1128
        %v1190 = vadd.f32 %v1038, %v1131
        %v1191 = vadd.f32 %v1039, %v1133
        %v1192 = vadd.f32 %v1040, %v1136
        %v1193 = vadd.f32 %v1041, %v1138
        %v1194 = vadd.f32 %v1042, %v1141
        %v1195 = vadd.f32 %v1043, %v1143
        %v1196 = vadd.f32 %v1044, %v1146
        %v1197 = vadd.f32 %v1045, %v1148
        %v1198 = vadd.f32 %v1046, %v1151
        %v1199 = vadd.f32 %v1047, %v1153
        %v1200 = vadd.f32 %v1048, %v1156
        %v1201 = vadd.f32 %v1049, %v1158
        %v1202 = vadd.f32 %v1050, %v1161
        %v1203 = vadd.f32 %v1051, %v1163
        %v1204 = vadd.f32 %v1052, %v1166
        %v1205 = vadd.f32 %v1053, %v1168
        %vm1206 = vsmask.f32 6400
        %v1207 = vrot.slane %v373, 1
        %v1208 = vrot.slane %v369, 2
        %v1209 = vor.u32 %v1207, %v1208
        %v1210 = vrot.slane %v381, 1
        %v1211 = vrot.slane %v377, 2
        %v1212 = vor.u32 %v1210, %v1211
        %v1213 = vsel %vm1206, %v1209, %v1212
        %v1214 = vrot.slane %v389, 1
        %v1215 = vrot.slane %v385, 2
        %v1216 = vor.u32 %v1214, %v1215
        %v1217 = vsel %vm1206, %v1212, %v1216
        %v1218 = vrot.slane %v397, 1
        %v1219 = vrot.slane %v393, 2
        %v1220 = vor.u32 %v1218, %v1219
        %v1221 = vsel %vm1206, %v1216, %v1220
        %v1222 = vrot.slane %v405, 1
        %v1223 = vrot.slane %v401, 2
        %v1224 = vor.u32 %v1222, %v1223
        %v1225 = vsel %vm1206, %v1220, %v1224
        %v1226 = vrot.slane %v413, 1
        %v1227 = vrot.slane %v409, 2
        %v1228 = vor.u32 %v1226, %v1227
        %v1229 = vsel %vm1206, %v1224, %v1228
        %v1230 = vrot.slane %v421, 1
        %v1231 = vrot.slane %v417, 2
        %v1232 = vor.u32 %v1230, %v1231
        %v1233 = vsel %vm1206, %v1228, %v1232
        %v1234 = vrot.slane %v429, 1
        %v1235 = vrot.slane %v425, 2
        %v1236 = vor.u32 %v1234, %v1235
        %v1237 = vsel %vm1206, %v1232, %v1236
        %v1238 = vrot.slane %v437, 1
        %v1239 = vrot.slane %v433, 2
        %v1240 = vor.u32 %v1238, %v1239
        %v1241 = vsel %vm1206, %v1236, %v1240
        %v1242 = vrot.slane %v445, 1
        %v1243 = vrot.slane %v441, 2
        %v1244 = vor.u32 %v1242, %v1243
        %v1245 = vsel %vm1206, %v1240, %v1244
        %v1246 = vrot.slane %v453, 1
        %v1247 = vrot.slane %v449, 2
        %v1248 = vor.u32 %v1246, %v1247
        %v1249 = vsel %vm1206, %v1244, %v1248
        %v1250 = vrot.slane %v461, 1
        %v1251 = vrot.slane %v457, 2
        %v1252 = vor.u32 %v1250, %v1251
        %v1253 = vsel %vm1206, %v1248, %v1252
        %v1254 = vrot.slane %v469, 1
        %v1255 = vrot.slane %v465, 2
        %v1256 = vor.u32 %v1254, %v1255
        %v1257 = vsel %vm1206, %v1252, %v1256
        %v1258 = vrot.slane %v477, 1
        %v1259 = vrot.slane %v473, 2
        %v1260 = vor.u32 %v1258, %v1259
        %v1261 = vsel %vm1206, %v1256, %v1260
        %v1262 = vrot.slane %v485, 1
        %v1263 = vrot.slane %v481, 2
        %v1264 = vor.u32 %v1262, %v1263
        %v1265 = vsel %vm1206, %v1260, %v1264
        %v1266 = vrot.slane %v493, 1
        %v1267 = vrot.slane %v489, 2
        %v1268 = vor.u32 %v1266, %v1267
        %v1269 = vsel %vm1206, %v1264, %v1268
        %v1270 = vrot.slane %v501, 1
        %v1271 = vrot.slane %v497, 2
        %v1272 = vor.u32 %v1270, %v1271
        %v1273 = vsel %vm1206, %v1268, %v1272
        %v1275 = vshrl.u32 %v1054, 16
        %v1277 = vrot.slane %v1275, 1
        %v1278 = vshll.u32 %v1054, 16
        %v1280 = vrot.slane %v1278, 2
        %v1281 = vor.u32 %v1277, %v1280
        %v1282 = vsel %vm1206, %v1272, %v1281
        %v1284 = vshrl.u32 %v1055, 16
        %v1286 = vrot.slane %v1284, 1
        %v1287 = vshll.u32 %v1055, 16
        %v1289 = vrot.slane %v1287, 2
        %v1290 = vor.u32 %v1286, %v1289
        %v1291 = vsel %vm1206, %v1281, %v1290
        %v1293 = vsel %vm509, %v1213, 0
        %v1296 = vsel %vm509, %v1217, 0
        %v1299 = vsel %vm509, %v1221, 0
        %v1302 = vsel %vm509, %v1225, 0
        %v1305 = vsel %vm509, %v1229, 0
        %v1308 = vsel %vm509, %v1233, 0
        %v1311 = vsel %vm509, %v1237, 0
        %v1314 = vsel %vm509, %v1241, 0
        %v1317 = vsel %vm509, %v1245, 0
        %v1320 = vsel %vm509, %v1249, 0
        %v1323 = vsel %vm509, %v1253, 0
        %v1326 = vsel %vm509, %v1257, 0
        %v1329 = vsel %vm509, %v1261, 0
        %v1332 = vsel %vm509, %v1265, 0
        %v1335 = vsel %vm509, %v1269, 0
        %v1338 = vsel %vm509, %v1273, 0
        %v1341 = vsel %vm509, %v1282, 0
        %v1344 = vsel %vm509, %v1291, 0
        %v1347 = vsel %vm564, %v336, 0
        %1349 = vmatpush.bf16.msra.mxu0 0
        %1350 = vmatpush.bf16.msra.mxu0 0
        %1351 = vmatpush.bf16.msra.mxu0 0
        %1352 = vmatpush.bf16.msra.mxu0 0
        %1353 = vmatpush.bf16.msra.mxu0 0
        %1354 = vmatpush.bf16.msra.mxu0 0
        %1355 = vmatpush.bf16.msra.mxu0 0
        %1356 = vmatpush.bf16.msra.mxu0 %v1347
        %1357 = vmatmul.bf16.gmra.mxu0 %v1293
        %v1358 = vpop.f32.mrf.mxu0
        %v1359 = vadd.f32 0.0, %v1358
        %v1360 = vpop.f32.mrf.mxu0
        %v1361 = vadd.f32 0.0, %v1360
        %1362 = vmatmul.bf16.gmra.mxu0 %v1296
        %v1363 = vpop.f32.mrf.mxu0
        %v1364 = vadd.f32 0.0, %v1363
        %v1365 = vpop.f32.mrf.mxu0
        %v1366 = vadd.f32 0.0, %v1365
        %1367 = vmatmul.bf16.gmra.mxu0 %v1299
        %v1368 = vpop.f32.mrf.mxu0
        %v1369 = vadd.f32 0.0, %v1368
        %v1370 = vpop.f32.mrf.mxu0
        %v1371 = vadd.f32 0.0, %v1370
        %1372 = vmatmul.bf16.gmra.mxu0 %v1302
        %v1373 = vpop.f32.mrf.mxu0
        %v1374 = vadd.f32 0.0, %v1373
        %v1375 = vpop.f32.mrf.mxu0
        %v1376 = vadd.f32 0.0, %v1375
        %1377 = vmatmul.bf16.gmra.mxu0 %v1305
        %v1378 = vpop.f32.mrf.mxu0
        %v1379 = vadd.f32 0.0, %v1378
        %v1380 = vpop.f32.mrf.mxu0
        %v1381 = vadd.f32 0.0, %v1380
        %1382 = vmatmul.bf16.gmra.mxu0 %v1308
        %v1383 = vpop.f32.mrf.mxu0
        %v1384 = vadd.f32 0.0, %v1383
        %v1385 = vpop.f32.mrf.mxu0
        %v1386 = vadd.f32 0.0, %v1385
        %1387 = vmatmul.bf16.gmra.mxu0 %v1311
        %v1388 = vpop.f32.mrf.mxu0
        %v1389 = vadd.f32 0.0, %v1388
        %v1390 = vpop.f32.mrf.mxu0
        %v1391 = vadd.f32 0.0, %v1390
        %1392 = vmatmul.bf16.gmra.mxu0 %v1314
        %v1393 = vpop.f32.mrf.mxu0
        %v1394 = vadd.f32 0.0, %v1393
        %v1395 = vpop.f32.mrf.mxu0
        %v1396 = vadd.f32 0.0, %v1395
        %1397 = vmatmul.bf16.gmra.mxu0 %v1317
        %v1398 = vpop.f32.mrf.mxu0
        %v1399 = vadd.f32 0.0, %v1398
        %v1400 = vpop.f32.mrf.mxu0
        %v1401 = vadd.f32 0.0, %v1400
        %1402 = vmatmul.bf16.gmra.mxu0 %v1320
        %v1403 = vpop.f32.mrf.mxu0
        %v1404 = vadd.f32 0.0, %v1403
        %v1405 = vpop.f32.mrf.mxu0
        %v1406 = vadd.f32 0.0, %v1405
        %1407 = vmatmul.bf16.gmra.mxu0 %v1323
        %v1408 = vpop.f32.mrf.mxu0
        %v1409 = vadd.f32 0.0, %v1408
        %v1410 = vpop.f32.mrf.mxu0
        %v1411 = vadd.f32 0.0, %v1410
        %1412 = vmatmul.bf16.gmra.mxu0 %v1326
        %v1413 = vpop.f32.mrf.mxu0
        %v1414 = vadd.f32 0.0, %v1413
        %v1415 = vpop.f32.mrf.mxu0
        %v1416 = vadd.f32 0.0, %v1415
        %1417 = vmatmul.bf16.gmra.mxu0 %v1329
        %v1418 = vpop.f32.mrf.mxu0
        %v1419 = vadd.f32 0.0, %v1418
        %v1420 = vpop.f32.mrf.mxu0
        %v1421 = vadd.f32 0.0, %v1420
        %1422 = vmatmul.bf16.gmra.mxu0 %v1332
        %v1423 = vpop.f32.mrf.mxu0
        %v1424 = vadd.f32 0.0, %v1423
        %v1425 = vpop.f32.mrf.mxu0
        %v1426 = vadd.f32 0.0, %v1425
        %1427 = vmatmul.bf16.gmra.mxu0 %v1335
        %v1428 = vpop.f32.mrf.mxu0
        %v1429 = vadd.f32 0.0, %v1428
        %v1430 = vpop.f32.mrf.mxu0
        %v1431 = vadd.f32 0.0, %v1430
        %1432 = vmatmul.bf16.gmra.mxu0 %v1338
        %v1433 = vpop.f32.mrf.mxu0
        %v1434 = vadd.f32 0.0, %v1433
        %v1435 = vpop.f32.mrf.mxu0
        %v1436 = vadd.f32 0.0, %v1435
        %1437 = vmatmul.bf16.gmra.mxu0 %v1341
        %v1438 = vpop.f32.mrf.mxu0
        %v1439 = vadd.f32 0.0, %v1438
        %v1440 = vpop.f32.mrf.mxu0
        %v1441 = vadd.f32 0.0, %v1440
        %1442 = vmatmul.bf16.gmra.mxu0 %v1344
        %v1443 = vpop.f32.mrf.mxu0
        %v1444 = vadd.f32 0.0, %v1443
        %v1445 = vpop.f32.mrf.mxu0
        %v1446 = vadd.f32 0.0, %v1445
        %1447 = vdwg.mxu0
        %v1448 = vadd.f32 %v1170, %v1359
        %v1449 = vadd.f32 %v1171, %v1361
        %v1450 = vadd.f32 %v1172, %v1364
        %v1451 = vadd.f32 %v1173, %v1366
        %v1452 = vadd.f32 %v1174, %v1369
        %v1453 = vadd.f32 %v1175, %v1371
        %v1454 = vadd.f32 %v1176, %v1374
        %v1455 = vadd.f32 %v1177, %v1376
        %v1456 = vadd.f32 %v1178, %v1379
        %v1457 = vadd.f32 %v1179, %v1381
        %v1458 = vadd.f32 %v1180, %v1384
        %v1459 = vadd.f32 %v1181, %v1386
        %v1460 = vadd.f32 %v1182, %v1389
        %v1461 = vadd.f32 %v1183, %v1391
        %v1462 = vadd.f32 %v1184, %v1394
        %v1463 = vadd.f32 %v1185, %v1396
        %v1464 = vadd.f32 %v1186, %v1399
        %v1465 = vadd.f32 %v1187, %v1401
        %v1466 = vadd.f32 %v1188, %v1404
        %v1467 = vadd.f32 %v1189, %v1406
        %v1468 = vadd.f32 %v1190, %v1409
        %v1469 = vadd.f32 %v1191, %v1411
        %v1470 = vadd.f32 %v1192, %v1414
        %v1471 = vadd.f32 %v1193, %v1416
        %v1472 = vadd.f32 %v1194, %v1419
        %v1473 = vadd.f32 %v1195, %v1421
        %v1474 = vadd.f32 %v1196, %v1424
        %v1475 = vadd.f32 %v1197, %v1426
        %v1476 = vadd.f32 %v1198, %v1429
        %v1477 = vadd.f32 %v1199, %v1431
        %v1478 = vadd.f32 %v1200, %v1434
        %v1479 = vadd.f32 %v1201, %v1436
        %v1480 = vadd.f32 %v1202, %v1439
        %v1481 = vadd.f32 %v1203, %v1441
        %v1482 = vadd.f32 %v1204, %v1444
        %v1483 = vadd.f32 %v1205, %v1446
        %vm1484 = vcmask 1045504
        %v1485 = vrot.slane %v342, 2
        %v1486 = vrot.slane %v343, 2
        %v1487 = vsel %vm1484, %v1485, %v1486
        %v1488 = vrot.slane %v344, 2
        %v1489 = vsel %vm1484, %v1486, %v1488
        %v1490 = vrot.slane %v345, 2
        %v1491 = vsel %vm1484, %v1488, %v1490
        %v1492 = vrot.slane %v346, 2
        %v1493 = vsel %vm1484, %v1490, %v1492
        %v1494 = vrot.slane %v347, 2
        %v1495 = vsel %vm1484, %v1492, %v1494
        %v1496 = vrot.slane %v348, 2
        %v1497 = vsel %vm1484, %v1494, %v1496
        %v1498 = vrot.slane %v349, 2
        %v1499 = vsel %vm1484, %v1496, %v1498
        %v1500 = vrot.slane %v350, 2
        %v1501 = vsel %vm1484, %v1498, %v1500
        %v1502 = vrot.slane %v351, 2
        %v1503 = vsel %vm1484, %v1500, %v1502
        %v1504 = vrot.slane %v352, 2
        %v1505 = vsel %vm1484, %v1502, %v1504
        %v1506 = vrot.slane %v353, 2
        %v1507 = vsel %vm1484, %v1504, %v1506
        %v1508 = vrot.slane %v354, 2
        %v1509 = vsel %vm1484, %v1506, %v1508
        %v1510 = vrot.slane %v355, 2
        %v1511 = vsel %vm1484, %v1508, %v1510
        %v1512 = vrot.slane %v356, 2
        %v1513 = vsel %vm1484, %v1510, %v1512
        %v1514 = vrot.slane %v357, 2
        %v1515 = vsel %vm1484, %v1512, %v1514
        %v1516 = vrot.slane %v358, 2
        %v1517 = vsel %vm1484, %v1514, %v1516
        %v1518 = vrot.slane %v1054, 2
        %v1519 = vsel %vm1484, %v1516, %v1518
        %v1520 = vrot.slane %v1055, 2
        %v1521 = vsel %vm1484, %v1518, %v1520
        %v1523 = vsel %vm509, %v1487, 0
        %v1526 = vsel %vm509, %v1489, 0
        %v1529 = vsel %vm509, %v1491, 0
        %v1532 = vsel %vm509, %v1493, 0
        %v1535 = vsel %vm509, %v1495, 0
        %v1538 = vsel %vm509, %v1497, 0
        %v1541 = vsel %vm509, %v1499, 0
        %v1544 = vsel %vm509, %v1501, 0
        %v1547 = vsel %vm509, %v1503, 0
        %v1550 = vsel %vm509, %v1505, 0
        %v1553 = vsel %vm509, %v1507, 0
        %v1556 = vsel %vm509, %v1509, 0
        %v1559 = vsel %vm509, %v1511, 0
        %v1562 = vsel %vm509, %v1513, 0
        %v1565 = vsel %vm509, %v1515, 0
        %v1568 = vsel %vm509, %v1517, 0
        %v1571 = vsel %vm509, %v1519, 0
        %v1574 = vsel %vm509, %v1521, 0
        %v1577 = vsel %vm564, %v337, 0
        %1579 = vmatpush.bf16.msra.mxu0 0
        %1580 = vmatpush.bf16.msra.mxu0 0
        %1581 = vmatpush.bf16.msra.mxu0 0
        %1582 = vmatpush.bf16.msra.mxu0 0
        %1583 = vmatpush.bf16.msra.mxu0 0
        %1584 = vmatpush.bf16.msra.mxu0 0
        %1585 = vmatpush.bf16.msra.mxu0 0
        %1586 = vmatpush.bf16.msra.mxu0 %v1577
        %1587 = vmatmul.bf16.gmra.mxu0 %v1523
        %v1588 = vpop.f32.mrf.mxu0
        %v1589 = vadd.f32 0.0, %v1588
        %v1590 = vpop.f32.mrf.mxu0
        %v1591 = vadd.f32 0.0, %v1590
        %1592 = vmatmul.bf16.gmra.mxu0 %v1526
        %v1593 = vpop.f32.mrf.mxu0
        %v1594 = vadd.f32 0.0, %v1593
        %v1595 = vpop.f32.mrf.mxu0
        %v1596 = vadd.f32 0.0, %v1595
        %1597 = vmatmul.bf16.gmra.mxu0 %v1529
        %v1598 = vpop.f32.mrf.mxu0
        %v1599 = vadd.f32 0.0, %v1598
        %v1600 = vpop.f32.mrf.mxu0
        %v1601 = vadd.f32 0.0, %v1600
        %1602 = vmatmul.bf16.gmra.mxu0 %v1532
        %v1603 = vpop.f32.mrf.mxu0
        %v1604 = vadd.f32 0.0, %v1603
        %v1605 = vpop.f32.mrf.mxu0
        %v1606 = vadd.f32 0.0, %v1605
        %1607 = vmatmul.bf16.gmra.mxu0 %v1535
        %v1608 = vpop.f32.mrf.mxu0
        %v1609 = vadd.f32 0.0, %v1608
        %v1610 = vpop.f32.mrf.mxu0
        %v1611 = vadd.f32 0.0, %v1610
        %1612 = vmatmul.bf16.gmra.mxu0 %v1538
        %v1613 = vpop.f32.mrf.mxu0
        %v1614 = vadd.f32 0.0, %v1613
        %v1615 = vpop.f32.mrf.mxu0
        %v1616 = vadd.f32 0.0, %v1615
        %1617 = vmatmul.bf16.gmra.mxu0 %v1541
        %v1618 = vpop.f32.mrf.mxu0
        %v1619 = vadd.f32 0.0, %v1618
        %v1620 = vpop.f32.mrf.mxu0
        %v1621 = vadd.f32 0.0, %v1620
        %1622 = vmatmul.bf16.gmra.mxu0 %v1544
        %v1623 = vpop.f32.mrf.mxu0
        %v1624 = vadd.f32 0.0, %v1623
        %v1625 = vpop.f32.mrf.mxu0
        %v1626 = vadd.f32 0.0, %v1625
        %1627 = vmatmul.bf16.gmra.mxu0 %v1547
        %v1628 = vpop.f32.mrf.mxu0
        %v1629 = vadd.f32 0.0, %v1628
        %v1630 = vpop.f32.mrf.mxu0
        %v1631 = vadd.f32 0.0, %v1630
        %1632 = vmatmul.bf16.gmra.mxu0 %v1550
        %v1633 = vpop.f32.mrf.mxu0
        %v1634 = vadd.f32 0.0, %v1633
        %v1635 = vpop.f32.mrf.mxu0
        %v1636 = vadd.f32 0.0, %v1635
        %1637 = vmatmul.bf16.gmra.mxu0 %v1553
        %v1638 = vpop.f32.mrf.mxu0
        %v1639 = vadd.f32 0.0, %v1638
        %v1640 = vpop.f32.mrf.mxu0
        %v1641 = vadd.f32 0.0, %v1640
        %1642 = vmatmul.bf16.gmra.mxu0 %v1556
        %v1643 = vpop.f32.mrf.mxu0
        %v1644 = vadd.f32 0.0, %v1643
        %v1645 = vpop.f32.mrf.mxu0
        %v1646 = vadd.f32 0.0, %v1645
        %1647 = vmatmul.bf16.gmra.mxu0 %v1559
        %v1648 = vpop.f32.mrf.mxu0
        %v1649 = vadd.f32 0.0, %v1648
        %v1650 = vpop.f32.mrf.mxu0
        %v1651 = vadd.f32 0.0, %v1650
        %1652 = vmatmul.bf16.gmra.mxu0 %v1562
        %v1653 = vpop.f32.mrf.mxu0
        %v1654 = vadd.f32 0.0, %v1653
        %v1655 = vpop.f32.mrf.mxu0
        %v1656 = vadd.f32 0.0, %v1655
        %1657 = vmatmul.bf16.gmra.mxu0 %v1565
        %v1658 = vpop.f32.mrf.mxu0
        %v1659 = vadd.f32 0.0, %v1658
        %v1660 = vpop.f32.mrf.mxu0
        %v1661 = vadd.f32 0.0, %v1660
        %1662 = vmatmul.bf16.gmra.mxu0 %v1568
        %v1663 = vpop.f32.mrf.mxu0
        %v1664 = vadd.f32 0.0, %v1663
        %v1665 = vpop.f32.mrf.mxu0
        %v1666 = vadd.f32 0.0, %v1665
        %1667 = vmatmul.bf16.gmra.mxu0 %v1571
        %v1668 = vpop.f32.mrf.mxu0
        %v1669 = vadd.f32 0.0, %v1668
        %v1670 = vpop.f32.mrf.mxu0
        %v1671 = vadd.f32 0.0, %v1670
        %1672 = vmatmul.bf16.gmra.mxu0 %v1574
        %v1673 = vpop.f32.mrf.mxu0
        %v1674 = vadd.f32 0.0, %v1673
        %v1675 = vpop.f32.mrf.mxu0
        %v1676 = vadd.f32 0.0, %v1675
        %1677 = vdwg.mxu0
        %v1678 = vadd.f32 %v1448, %v1589
        %v1679 = vadd.f32 %v1449, %v1591
        %v1680 = vadd.f32 %v1450, %v1594
        %v1681 = vadd.f32 %v1451, %v1596
        %v1682 = vadd.f32 %v1452, %v1599
        %v1683 = vadd.f32 %v1453, %v1601
        %v1684 = vadd.f32 %v1454, %v1604
        %v1685 = vadd.f32 %v1455, %v1606
        %v1686 = vadd.f32 %v1456, %v1609
        %v1687 = vadd.f32 %v1457, %v1611
        %v1688 = vadd.f32 %v1458, %v1614
        %v1689 = vadd.f32 %v1459, %v1616
        %v1690 = vadd.f32 %v1460, %v1619
        %v1691 = vadd.f32 %v1461, %v1621
        %v1692 = vadd.f32 %v1462, %v1624
        %v1693 = vadd.f32 %v1463, %v1626
        %v1694 = vadd.f32 %v1464, %v1629
        %v1695 = vadd.f32 %v1465, %v1631
        %v1696 = vadd.f32 %v1466, %v1634
        %v1697 = vadd.f32 %v1467, %v1636
        %v1698 = vadd.f32 %v1468, %v1639
        %v1699 = vadd.f32 %v1469, %v1641
        %v1700 = vadd.f32 %v1470, %v1644
        %v1701 = vadd.f32 %v1471, %v1646
        %v1702 = vadd.f32 %v1472, %v1649
        %v1703 = vadd.f32 %v1473, %v1651
        %v1704 = vadd.f32 %v1474, %v1654
        %v1705 = vadd.f32 %v1475, %v1656
        %v1706 = vadd.f32 %v1476, %v1659
        %v1707 = vadd.f32 %v1477, %v1661
        %v1708 = vadd.f32 %v1478, %v1664
        %v1709 = vadd.f32 %v1479, %v1666
        %v1710 = vadd.f32 %v1480, %v1669
        %v1711 = vadd.f32 %v1481, %v1671
        %v1712 = vadd.f32 %v1482, %v1674
        %v1713 = vadd.f32 %v1483, %v1676
        %v1714 = vpack.c.bf16 %v330, %v329
        %v1715 = vpack.c.bf16 %v331, %v331
        %v1718 = vrot.slane %v1714, 2
        %v1719 = vsel %vm1484, %v1518, %v1718
        %v1720 = vrot.slane %v1715, 2
        %v1721 = vsel %vm1484, %v1718, %v1720
        %v1723 = vsel %vm509, %v1719, 0
        %v1726 = vsel %vm509, %v1721, 0
        %v1729 = vsel %vm564, %v338, 0
        %1731 = vmatpush.bf16.msra.mxu0 0
        %1732 = vmatpush.bf16.msra.mxu0 0
        %1733 = vmatpush.bf16.msra.mxu0 0
        %1734 = vmatpush.bf16.msra.mxu0 0
        %1735 = vmatpush.bf16.msra.mxu0 0
        %1736 = vmatpush.bf16.msra.mxu0 0
        %1737 = vmatpush.bf16.msra.mxu0 0
        %1738 = vmatpush.bf16.msra.mxu0 %v1729
        %1739 = vmatmul.bf16.gmra.mxu0 %v1526
        %v1740 = vpop.f32.mrf.mxu0
        %v1741 = vadd.f32 0.0, %v1740
        %v1742 = vpop.f32.mrf.mxu0
        %v1743 = vadd.f32 0.0, %v1742
        %1744 = vmatmul.bf16.gmra.mxu0 %v1529
        %v1745 = vpop.f32.mrf.mxu0
        %v1746 = vadd.f32 0.0, %v1745
        %v1747 = vpop.f32.mrf.mxu0
        %v1748 = vadd.f32 0.0, %v1747
        %1749 = vmatmul.bf16.gmra.mxu0 %v1532
        %v1750 = vpop.f32.mrf.mxu0
        %v1751 = vadd.f32 0.0, %v1750
        %v1752 = vpop.f32.mrf.mxu0
        %v1753 = vadd.f32 0.0, %v1752
        %1754 = vmatmul.bf16.gmra.mxu0 %v1535
        %v1755 = vpop.f32.mrf.mxu0
        %v1756 = vadd.f32 0.0, %v1755
        %v1757 = vpop.f32.mrf.mxu0
        %v1758 = vadd.f32 0.0, %v1757
        %1759 = vmatmul.bf16.gmra.mxu0 %v1538
        %v1760 = vpop.f32.mrf.mxu0
        %v1761 = vadd.f32 0.0, %v1760
        %v1762 = vpop.f32.mrf.mxu0
        %v1763 = vadd.f32 0.0, %v1762
        %1764 = vmatmul.bf16.gmra.mxu0 %v1541
        %v1765 = vpop.f32.mrf.mxu0
        %v1766 = vadd.f32 0.0, %v1765
        %v1767 = vpop.f32.mrf.mxu0
        %v1768 = vadd.f32 0.0, %v1767
        %1769 = vmatmul.bf16.gmra.mxu0 %v1544
        %v1770 = vpop.f32.mrf.mxu0
        %v1771 = vadd.f32 0.0, %v1770
        %v1772 = vpop.f32.mrf.mxu0
        %v1773 = vadd.f32 0.0, %v1772
        %1774 = vmatmul.bf16.gmra.mxu0 %v1547
        %v1775 = vpop.f32.mrf.mxu0
        %v1776 = vadd.f32 0.0, %v1775
        %v1777 = vpop.f32.mrf.mxu0
        %v1778 = vadd.f32 0.0, %v1777
        %1779 = vmatmul.bf16.gmra.mxu0 %v1550
        %v1780 = vpop.f32.mrf.mxu0
        %v1781 = vadd.f32 0.0, %v1780
        %v1782 = vpop.f32.mrf.mxu0
        %v1783 = vadd.f32 0.0, %v1782
        %1784 = vmatmul.bf16.gmra.mxu0 %v1553
        %v1785 = vpop.f32.mrf.mxu0
        %v1786 = vadd.f32 0.0, %v1785
        %v1787 = vpop.f32.mrf.mxu0
        %v1788 = vadd.f32 0.0, %v1787
        %1789 = vmatmul.bf16.gmra.mxu0 %v1556
        %v1790 = vpop.f32.mrf.mxu0
        %v1791 = vadd.f32 0.0, %v1790
        %v1792 = vpop.f32.mrf.mxu0
        %v1793 = vadd.f32 0.0, %v1792
        %1794 = vmatmul.bf16.gmra.mxu0 %v1559
        %v1795 = vpop.f32.mrf.mxu0
        %v1796 = vadd.f32 0.0, %v1795
        %v1797 = vpop.f32.mrf.mxu0
        %v1798 = vadd.f32 0.0, %v1797
        %1799 = vmatmul.bf16.gmra.mxu0 %v1562
        %v1800 = vpop.f32.mrf.mxu0
        %v1801 = vadd.f32 0.0, %v1800
        %v1802 = vpop.f32.mrf.mxu0
        %v1803 = vadd.f32 0.0, %v1802
        %1804 = vmatmul.bf16.gmra.mxu0 %v1565
        %v1805 = vpop.f32.mrf.mxu0
        %v1806 = vadd.f32 0.0, %v1805
        %v1807 = vpop.f32.mrf.mxu0
        %v1808 = vadd.f32 0.0, %v1807
        %1809 = vmatmul.bf16.gmra.mxu0 %v1568
        %v1810 = vpop.f32.mrf.mxu0
        %v1811 = vadd.f32 0.0, %v1810
        %v1812 = vpop.f32.mrf.mxu0
        %v1813 = vadd.f32 0.0, %v1812
        %1814 = vmatmul.bf16.gmra.mxu0 %v1571
        %v1815 = vpop.f32.mrf.mxu0
        %v1816 = vadd.f32 0.0, %v1815
        %v1817 = vpop.f32.mrf.mxu0
        %v1818 = vadd.f32 0.0, %v1817
        %1819 = vmatmul.bf16.gmra.mxu0 %v1723
        %v1820 = vpop.f32.mrf.mxu0
        %v1821 = vadd.f32 0.0, %v1820
        %v1822 = vpop.f32.mrf.mxu0
        %v1823 = vadd.f32 0.0, %v1822
        %1824 = vmatmul.bf16.gmra.mxu0 %v1726
        %v1825 = vpop.f32.mrf.mxu0
        %v1826 = vadd.f32 0.0, %v1825
        %v1827 = vpop.f32.mrf.mxu0
        %v1828 = vadd.f32 0.0, %v1827
        %1829 = vdwg.mxu0
        %v1830 = vadd.f32 %v1678, %v1741
        %v1831 = vadd.f32 %v1679, %v1743
        %v1832 = vadd.f32 %v1680, %v1746
        %v1833 = vadd.f32 %v1681, %v1748
        %v1834 = vadd.f32 %v1682, %v1751
        %v1835 = vadd.f32 %v1683, %v1753
        %v1836 = vadd.f32 %v1684, %v1756
        %v1837 = vadd.f32 %v1685, %v1758
        %v1838 = vadd.f32 %v1686, %v1761
        %v1839 = vadd.f32 %v1687, %v1763
        %v1840 = vadd.f32 %v1688, %v1766
        %v1841 = vadd.f32 %v1689, %v1768
        %v1842 = vadd.f32 %v1690, %v1771
        %v1843 = vadd.f32 %v1691, %v1773
        %v1844 = vadd.f32 %v1692, %v1776
        %v1845 = vadd.f32 %v1693, %v1778
        %v1846 = vadd.f32 %v1694, %v1781
        %v1847 = vadd.f32 %v1695, %v1783
        %v1848 = vadd.f32 %v1696, %v1786
        %v1849 = vadd.f32 %v1697, %v1788
        %v1850 = vadd.f32 %v1698, %v1791
        %v1851 = vadd.f32 %v1699, %v1793
        %v1852 = vadd.f32 %v1700, %v1796
        %v1853 = vadd.f32 %v1701, %v1798
        %v1854 = vadd.f32 %v1702, %v1801
        %v1855 = vadd.f32 %v1703, %v1803
        %v1856 = vadd.f32 %v1704, %v1806
        %v1857 = vadd.f32 %v1705, %v1808
        %v1858 = vadd.f32 %v1706, %v1811
        %v1859 = vadd.f32 %v1707, %v1813
        %v1860 = vadd.f32 %v1708, %v1816
        %v1861 = vadd.f32 %v1709, %v1818
        %v1862 = vadd.f32 %v1710, %v1821
        %v1863 = vadd.f32 %v1711, %v1823
        %v1864 = vadd.f32 %v1712, %v1826
        %v1865 = vadd.f32 %v1713, %v1828
        %vm1866 = vsmask.f32 5376
        %v1867 = vrot.slane %v381, 2
        %v1868 = vrot.slane %v377, 3
        %v1869 = vor.u32 %v1867, %v1868
        %v1870 = vrot.slane %v389, 2
        %v1871 = vrot.slane %v385, 3
        %v1872 = vor.u32 %v1870, %v1871
        %v1873 = vsel %vm1866, %v1869, %v1872
        %v1874 = vrot.slane %v397, 2
        %v1875 = vrot.slane %v393, 3
        %v1876 = vor.u32 %v1874, %v1875
        %v1877 = vsel %vm1866, %v1872, %v1876
        %v1878 = vrot.slane %v405, 2
        %v1879 = vrot.slane %v401, 3
        %v1880 = vor.u32 %v1878, %v1879
        %v1881 = vsel %vm1866, %v1876, %v1880
        %v1882 = vrot.slane %v413, 2
        %v1883 = vrot.slane %v409, 3
        %v1884 = vor.u32 %v1882, %v1883
        %v1885 = vsel %vm1866, %v1880, %v1884
        %v1886 = vrot.slane %v421, 2
        %v1887 = vrot.slane %v417, 3
        %v1888 = vor.u32 %v1886, %v1887
        %v1889 = vsel %vm1866, %v1884, %v1888
        %v1890 = vrot.slane %v429, 2
        %v1891 = vrot.slane %v425, 3
        %v1892 = vor.u32 %v1890, %v1891
        %v1893 = vsel %vm1866, %v1888, %v1892
        %v1894 = vrot.slane %v437, 2
        %v1895 = vrot.slane %v433, 3
        %v1896 = vor.u32 %v1894, %v1895
        %v1897 = vsel %vm1866, %v1892, %v1896
        %v1898 = vrot.slane %v445, 2
        %v1899 = vrot.slane %v441, 3
        %v1900 = vor.u32 %v1898, %v1899
        %v1901 = vsel %vm1866, %v1896, %v1900
        %v1902 = vrot.slane %v453, 2
        %v1903 = vrot.slane %v449, 3
        %v1904 = vor.u32 %v1902, %v1903
        %v1905 = vsel %vm1866, %v1900, %v1904
        %v1906 = vrot.slane %v461, 2
        %v1907 = vrot.slane %v457, 3
        %v1908 = vor.u32 %v1906, %v1907
        %v1909 = vsel %vm1866, %v1904, %v1908
        %v1910 = vrot.slane %v469, 2
        %v1911 = vrot.slane %v465, 3
        %v1912 = vor.u32 %v1910, %v1911
        %v1913 = vsel %vm1866, %v1908, %v1912
        %v1914 = vrot.slane %v477, 2
        %v1915 = vrot.slane %v473, 3
        %v1916 = vor.u32 %v1914, %v1915
        %v1917 = vsel %vm1866, %v1912, %v1916
        %v1918 = vrot.slane %v485, 2
        %v1919 = vrot.slane %v481, 3
        %v1920 = vor.u32 %v1918, %v1919
        %v1921 = vsel %vm1866, %v1916, %v1920
        %v1922 = vrot.slane %v493, 2
        %v1923 = vrot.slane %v489, 3
        %v1924 = vor.u32 %v1922, %v1923
        %v1925 = vsel %vm1866, %v1920, %v1924
        %v1926 = vrot.slane %v501, 2
        %v1927 = vrot.slane %v497, 3
        %v1928 = vor.u32 %v1926, %v1927
        %v1929 = vsel %vm1866, %v1924, %v1928
        %v1930 = vrot.slane %v1275, 2
        %v1931 = vrot.slane %v1278, 3
        %v1932 = vor.u32 %v1930, %v1931
        %v1933 = vsel %vm1866, %v1928, %v1932
        %v1935 = vshrl.u32 %v1714, 16
        %v1937 = vrot.slane %v1935, 2
        %v1938 = vshll.u32 %v1714, 16
        %v1940 = vrot.slane %v1938, 3
        %v1941 = vor.u32 %v1937, %v1940
        %v1942 = vsel %vm1866, %v1932, %v1941
        %v1944 = vshrl.u32 %v1715, 16
        %v1946 = vrot.slane %v1944, 2
        %v1947 = vshll.u32 %v1715, 16
        %v1949 = vrot.slane %v1947, 3
        %v1950 = vor.u32 %v1946, %v1949
        %v1951 = vsel %vm1866, %v1941, %v1950
        %v1953 = vsel %vm509, %v1873, 0
        %v1956 = vsel %vm509, %v1877, 0
        %v1959 = vsel %vm509, %v1881, 0
        %v1962 = vsel %vm509, %v1885, 0
        %v1965 = vsel %vm509, %v1889, 0
        %v1968 = vsel %vm509, %v1893, 0
        %v1971 = vsel %vm509, %v1897, 0
        %v1974 = vsel %vm509, %v1901, 0
        %v1977 = vsel %vm509, %v1905, 0
        %v1980 = vsel %vm509, %v1909, 0
        %v1983 = vsel %vm509, %v1913, 0
        %v1986 = vsel %vm509, %v1917, 0
        %v1989 = vsel %vm509, %v1921, 0
        %v1992 = vsel %vm509, %v1925, 0
        %v1995 = vsel %vm509, %v1929, 0
        %v1998 = vsel %vm509, %v1933, 0
        %v2001 = vsel %vm509, %v1942, 0
        %v2004 = vsel %vm509, %v1951, 0
        %v2007 = vsel %vm564, %v339, 0
        %2009 = vmatpush.bf16.msra.mxu0 0
        %2010 = vmatpush.bf16.msra.mxu0 0
        %2011 = vmatpush.bf16.msra.mxu0 0
        %2012 = vmatpush.bf16.msra.mxu0 0
        %2013 = vmatpush.bf16.msra.mxu0 0
        %2014 = vmatpush.bf16.msra.mxu0 0
        %2015 = vmatpush.bf16.msra.mxu0 0
        %2016 = vmatpush.bf16.msra.mxu0 %v2007
        %2017 = vmatmul.bf16.gmra.mxu0 %v1953
        %v2018 = vpop.f32.mrf.mxu0
        %v2019 = vadd.f32 0.0, %v2018
        %v2020 = vpop.f32.mrf.mxu0
        %v2021 = vadd.f32 0.0, %v2020
        %2022 = vmatmul.bf16.gmra.mxu0 %v1956
        %v2023 = vpop.f32.mrf.mxu0
        %v2024 = vadd.f32 0.0, %v2023
        %v2025 = vpop.f32.mrf.mxu0
        %v2026 = vadd.f32 0.0, %v2025
        %2027 = vmatmul.bf16.gmra.mxu0 %v1959
        %v2028 = vpop.f32.mrf.mxu0
        %v2029 = vadd.f32 0.0, %v2028
        %v2030 = vpop.f32.mrf.mxu0
        %v2031 = vadd.f32 0.0, %v2030
        %2032 = vmatmul.bf16.gmra.mxu0 %v1962
        %v2033 = vpop.f32.mrf.mxu0
        %v2034 = vadd.f32 0.0, %v2033
        %v2035 = vpop.f32.mrf.mxu0
        %v2036 = vadd.f32 0.0, %v2035
        %2037 = vmatmul.bf16.gmra.mxu0 %v1965
        %v2038 = vpop.f32.mrf.mxu0
        %v2039 = vadd.f32 0.0, %v2038
        %v2040 = vpop.f32.mrf.mxu0
        %v2041 = vadd.f32 0.0, %v2040
        %2042 = vmatmul.bf16.gmra.mxu0 %v1968
        %v2043 = vpop.f32.mrf.mxu0
        %v2044 = vadd.f32 0.0, %v2043
        %v2045 = vpop.f32.mrf.mxu0
        %v2046 = vadd.f32 0.0, %v2045
        %2047 = vmatmul.bf16.gmra.mxu0 %v1971
        %v2048 = vpop.f32.mrf.mxu0
        %v2049 = vadd.f32 0.0, %v2048
        %v2050 = vpop.f32.mrf.mxu0
        %v2051 = vadd.f32 0.0, %v2050
        %2052 = vmatmul.bf16.gmra.mxu0 %v1974
        %v2053 = vpop.f32.mrf.mxu0
        %v2054 = vadd.f32 0.0, %v2053
        %v2055 = vpop.f32.mrf.mxu0
        %v2056 = vadd.f32 0.0, %v2055
        %2057 = vmatmul.bf16.gmra.mxu0 %v1977
        %v2058 = vpop.f32.mrf.mxu0
        %v2059 = vadd.f32 0.0, %v2058
        %v2060 = vpop.f32.mrf.mxu0
        %v2061 = vadd.f32 0.0, %v2060
        %2062 = vmatmul.bf16.gmra.mxu0 %v1980
        %v2063 = vpop.f32.mrf.mxu0
        %v2064 = vadd.f32 0.0, %v2063
        %v2065 = vpop.f32.mrf.mxu0
        %v2066 = vadd.f32 0.0, %v2065
        %2067 = vmatmul.bf16.gmra.mxu0 %v1983
        %v2068 = vpop.f32.mrf.mxu0
        %v2069 = vadd.f32 0.0, %v2068
        %v2070 = vpop.f32.mrf.mxu0
        %v2071 = vadd.f32 0.0, %v2070
        %2072 = vmatmul.bf16.gmra.mxu0 %v1986
        %v2073 = vpop.f32.mrf.mxu0
        %v2074 = vadd.f32 0.0, %v2073
        %v2075 = vpop.f32.mrf.mxu0
        %v2076 = vadd.f32 0.0, %v2075
        %2077 = vmatmul.bf16.gmra.mxu0 %v1989
        %v2078 = vpop.f32.mrf.mxu0
        %v2079 = vadd.f32 0.0, %v2078
        %v2080 = vpop.f32.mrf.mxu0
        %v2081 = vadd.f32 0.0, %v2080
        %2082 = vmatmul.bf16.gmra.mxu0 %v1992
        %v2083 = vpop.f32.mrf.mxu0
        %v2084 = vadd.f32 0.0, %v2083
        %v2085 = vpop.f32.mrf.mxu0
        %v2086 = vadd.f32 0.0, %v2085
        %2087 = vmatmul.bf16.gmra.mxu0 %v1995
        %v2088 = vpop.f32.mrf.mxu0
        %v2089 = vadd.f32 0.0, %v2088
        %v2090 = vpop.f32.mrf.mxu0
        %v2091 = vadd.f32 0.0, %v2090
        %2092 = vmatmul.bf16.gmra.mxu0 %v1998
        %v2093 = vpop.f32.mrf.mxu0
        %v2094 = vadd.f32 0.0, %v2093
        %v2095 = vpop.f32.mrf.mxu0
        %v2096 = vadd.f32 0.0, %v2095
        %2097 = vmatmul.bf16.gmra.mxu0 %v2001
        %v2098 = vpop.f32.mrf.mxu0
        %v2099 = vadd.f32 0.0, %v2098
        %v2100 = vpop.f32.mrf.mxu0
        %v2101 = vadd.f32 0.0, %v2100
        %2102 = vmatmul.bf16.gmra.mxu0 %v2004
        %v2103 = vpop.f32.mrf.mxu0
        %v2104 = vadd.f32 0.0, %v2103
        %v2105 = vpop.f32.mrf.mxu0
        %v2106 = vadd.f32 0.0, %v2105
        %2107 = vdwg.mxu0
        %v2108 = vadd.f32 %v1830, %v2019
        %v2109 = vadd.f32 %v1831, %v2021
        %v2110 = vadd.f32 %v1832, %v2024
        %v2111 = vadd.f32 %v1833, %v2026
        %v2112 = vadd.f32 %v1834, %v2029
        %v2113 = vadd.f32 %v1835, %v2031
        %v2114 = vadd.f32 %v1836, %v2034
        %v2115 = vadd.f32 %v1837, %v2036
        %v2116 = vadd.f32 %v1838, %v2039
        %v2117 = vadd.f32 %v1839, %v2041
        %v2118 = vadd.f32 %v1840, %v2044
        %v2119 = vadd.f32 %v1841, %v2046
        %v2120 = vadd.f32 %v1842, %v2049
        %v2121 = vadd.f32 %v1843, %v2051
        %v2122 = vadd.f32 %v1844, %v2054
        %v2123 = vadd.f32 %v1845, %v2056
        %v2124 = vadd.f32 %v1846, %v2059
        %v2125 = vadd.f32 %v1847, %v2061
        %v2126 = vadd.f32 %v1848, %v2064
        %v2127 = vadd.f32 %v1849, %v2066
        %v2128 = vadd.f32 %v1850, %v2069
        %v2129 = vadd.f32 %v1851, %v2071
        %v2130 = vadd.f32 %v1852, %v2074
        %v2131 = vadd.f32 %v1853, %v2076
        %v2132 = vadd.f32 %v1854, %v2079
        %v2133 = vadd.f32 %v1855, %v2081
        %v2134 = vadd.f32 %v1856, %v2084
        %v2135 = vadd.f32 %v1857, %v2086
        %v2136 = vadd.f32 %v1858, %v2089
        %v2137 = vadd.f32 %v1859, %v2091
        %v2138 = vadd.f32 %v1860, %v2094
        %v2139 = vadd.f32 %v1861, %v2096
        %v2140 = vadd.f32 %v1862, %v2099
        %v2141 = vadd.f32 %v1863, %v2101
        %v2142 = vadd.f32 %v1864, %v2104
        %v2143 = vadd.f32 %v1865, %v2106
        %vm2144 = vcmask 1044480
        %v2145 = vrot.slane %v343, 3
        %v2146 = vrot.slane %v344, 3
        %v2147 = vsel %vm2144, %v2145, %v2146
        %v2148 = vrot.slane %v345, 3
        %v2149 = vsel %vm2144, %v2146, %v2148
        %v2150 = vrot.slane %v346, 3
        %v2151 = vsel %vm2144, %v2148, %v2150
        %v2152 = vrot.slane %v347, 3
        %v2153 = vsel %vm2144, %v2150, %v2152
        %v2154 = vrot.slane %v348, 3
        %v2155 = vsel %vm2144, %v2152, %v2154
        %v2156 = vrot.slane %v349, 3
        %v2157 = vsel %vm2144, %v2154, %v2156
        %v2158 = vrot.slane %v350, 3
        %v2159 = vsel %vm2144, %v2156, %v2158
        %v2160 = vrot.slane %v351, 3
        %v2161 = vsel %vm2144, %v2158, %v2160
        %v2162 = vrot.slane %v352, 3
        %v2163 = vsel %vm2144, %v2160, %v2162
        %v2164 = vrot.slane %v353, 3
        %v2165 = vsel %vm2144, %v2162, %v2164
        %v2166 = vrot.slane %v354, 3
        %v2167 = vsel %vm2144, %v2164, %v2166
        %v2168 = vrot.slane %v355, 3
        %v2169 = vsel %vm2144, %v2166, %v2168
        %v2170 = vrot.slane %v356, 3
        %v2171 = vsel %vm2144, %v2168, %v2170
        %v2172 = vrot.slane %v357, 3
        %v2173 = vsel %vm2144, %v2170, %v2172
        %v2174 = vrot.slane %v358, 3
        %v2175 = vsel %vm2144, %v2172, %v2174
        %v2176 = vrot.slane %v1054, 3
        %v2177 = vsel %vm2144, %v2174, %v2176
        %v2178 = vrot.slane %v1714, 3
        %v2179 = vsel %vm2144, %v2176, %v2178
        %v2180 = vrot.slane %v1715, 3
        %v2181 = vsel %vm2144, %v2178, %v2180
        %v2183 = vsel %vm509, %v2147, 0
        %v2186 = vsel %vm509, %v2149, 0
        %v2189 = vsel %vm509, %v2151, 0
        %v2192 = vsel %vm509, %v2153, 0
        %v2195 = vsel %vm509, %v2155, 0
        %v2198 = vsel %vm509, %v2157, 0
        %v2201 = vsel %vm509, %v2159, 0
        %v2204 = vsel %vm509, %v2161, 0
        %v2207 = vsel %vm509, %v2163, 0
        %v2210 = vsel %vm509, %v2165, 0
        %v2213 = vsel %vm509, %v2167, 0
        %v2216 = vsel %vm509, %v2169, 0
        %v2219 = vsel %vm509, %v2171, 0
        %v2222 = vsel %vm509, %v2173, 0
        %v2225 = vsel %vm509, %v2175, 0
        %v2228 = vsel %vm509, %v2177, 0
        %v2231 = vsel %vm509, %v2179, 0
        %v2234 = vsel %vm509, %v2181, 0
        %v2237 = vsel %vm564, %v340, 0
        %2239 = vmatpush.bf16.msra.mxu0 0
        %2240 = vmatpush.bf16.msra.mxu0 0
        %2241 = vmatpush.bf16.msra.mxu0 0
        %2242 = vmatpush.bf16.msra.mxu0 0
        %2243 = vmatpush.bf16.msra.mxu0 0
        %2244 = vmatpush.bf16.msra.mxu0 0
        %2245 = vmatpush.bf16.msra.mxu0 0
        %2246 = vmatpush.bf16.msra.mxu0 %v2237
        %2247 = vmatmul.bf16.gmra.mxu0 %v2183
        %v2248 = vpop.f32.mrf.mxu0
        %v2249 = vadd.f32 0.0, %v2248
        %v2250 = vpop.f32.mrf.mxu0
        %v2251 = vadd.f32 0.0, %v2250
        %2252 = vmatmul.bf16.gmra.mxu0 %v2186
        %v2253 = vpop.f32.mrf.mxu0
        %v2254 = vadd.f32 0.0, %v2253
        %v2255 = vpop.f32.mrf.mxu0
        %v2256 = vadd.f32 0.0, %v2255
        %2257 = vmatmul.bf16.gmra.mxu0 %v2189
        %v2258 = vpop.f32.mrf.mxu0
        %v2259 = vadd.f32 0.0, %v2258
        %v2260 = vpop.f32.mrf.mxu0
        %v2261 = vadd.f32 0.0, %v2260
        %2262 = vmatmul.bf16.gmra.mxu0 %v2192
        %v2263 = vpop.f32.mrf.mxu0
        %v2264 = vadd.f32 0.0, %v2263
        %v2265 = vpop.f32.mrf.mxu0
        %v2266 = vadd.f32 0.0, %v2265
        %2267 = vmatmul.bf16.gmra.mxu0 %v2195
        %v2268 = vpop.f32.mrf.mxu0
        %v2269 = vadd.f32 0.0, %v2268
        %v2270 = vpop.f32.mrf.mxu0
        %v2271 = vadd.f32 0.0, %v2270
        %2272 = vmatmul.bf16.gmra.mxu0 %v2198
        %v2273 = vpop.f32.mrf.mxu0
        %v2274 = vadd.f32 0.0, %v2273
        %v2275 = vpop.f32.mrf.mxu0
        %v2276 = vadd.f32 0.0, %v2275
        %2277 = vmatmul.bf16.gmra.mxu0 %v2201
        %v2278 = vpop.f32.mrf.mxu0
        %v2279 = vadd.f32 0.0, %v2278
        %v2280 = vpop.f32.mrf.mxu0
        %v2281 = vadd.f32 0.0, %v2280
        %2282 = vmatmul.bf16.gmra.mxu0 %v2204
        %v2283 = vpop.f32.mrf.mxu0
        %v2284 = vadd.f32 0.0, %v2283
        %v2285 = vpop.f32.mrf.mxu0
        %v2286 = vadd.f32 0.0, %v2285
        %2287 = vmatmul.bf16.gmra.mxu0 %v2207
        %v2288 = vpop.f32.mrf.mxu0
        %v2289 = vadd.f32 0.0, %v2288
        %v2290 = vpop.f32.mrf.mxu0
        %v2291 = vadd.f32 0.0, %v2290
        %2292 = vmatmul.bf16.gmra.mxu0 %v2210
        %v2293 = vpop.f32.mrf.mxu0
        %v2294 = vadd.f32 0.0, %v2293
        %v2295 = vpop.f32.mrf.mxu0
        %v2296 = vadd.f32 0.0, %v2295
        %2297 = vmatmul.bf16.gmra.mxu0 %v2213
        %v2298 = vpop.f32.mrf.mxu0
        %v2299 = vadd.f32 0.0, %v2298
        %v2300 = vpop.f32.mrf.mxu0
        %v2301 = vadd.f32 0.0, %v2300
        %2302 = vmatmul.bf16.gmra.mxu0 %v2216
        %v2303 = vpop.f32.mrf.mxu0
        %v2304 = vadd.f32 0.0, %v2303
        %v2305 = vpop.f32.mrf.mxu0
        %v2306 = vadd.f32 0.0, %v2305
        %2307 = vmatmul.bf16.gmra.mxu0 %v2219
        %v2308 = vpop.f32.mrf.mxu0
        %v2309 = vadd.f32 0.0, %v2308
        %v2310 = vpop.f32.mrf.mxu0
        %v2311 = vadd.f32 0.0, %v2310
        %2312 = vmatmul.bf16.gmra.mxu0 %v2222
        %v2313 = vpop.f32.mrf.mxu0
        %v2314 = vadd.f32 0.0, %v2313
        %v2315 = vpop.f32.mrf.mxu0
        %v2316 = vadd.f32 0.0, %v2315
        %2317 = vmatmul.bf16.gmra.mxu0 %v2225
        %v2318 = vpop.f32.mrf.mxu0
        %v2319 = vadd.f32 0.0, %v2318
        %v2320 = vpop.f32.mrf.mxu0
        %v2321 = vadd.f32 0.0, %v2320
        %2322 = vmatmul.bf16.gmra.mxu0 %v2228
        %v2323 = vpop.f32.mrf.mxu0
        %v2324 = vadd.f32 0.0, %v2323
        %v2325 = vpop.f32.mrf.mxu0
        %v2326 = vadd.f32 0.0, %v2325
        %2327 = vmatmul.bf16.gmra.mxu0 %v2231
        %v2328 = vpop.f32.mrf.mxu0
        %v2329 = vadd.f32 0.0, %v2328
        %v2330 = vpop.f32.mrf.mxu0
        %v2331 = vadd.f32 0.0, %v2330
        %2332 = vmatmul.bf16.gmra.mxu0 %v2234
        %v2333 = vpop.f32.mrf.mxu0
        %v2334 = vadd.f32 0.0, %v2333
        %v2335 = vpop.f32.mrf.mxu0
        %v2336 = vadd.f32 0.0, %v2335
        %2337 = vdwg.mxu0
        %v2338 = vadd.f32 %v2108, %v2249
        %v2339 = vadd.f32 %v2109, %v2251
        %v2340 = vadd.f32 %v2110, %v2254
        %v2341 = vadd.f32 %v2111, %v2256
        %v2342 = vadd.f32 %v2112, %v2259
        %v2343 = vadd.f32 %v2113, %v2261
        %v2344 = vadd.f32 %v2114, %v2264
        %v2345 = vadd.f32 %v2115, %v2266
        %v2346 = vadd.f32 %v2116, %v2269
        %v2347 = vadd.f32 %v2117, %v2271
        %v2348 = vadd.f32 %v2118, %v2274
        %v2349 = vadd.f32 %v2119, %v2276
        %v2350 = vadd.f32 %v2120, %v2279
        %v2351 = vadd.f32 %v2121, %v2281
        %v2352 = vadd.f32 %v2122, %v2284
        %v2353 = vadd.f32 %v2123, %v2286
        %v2354 = vadd.f32 %v2124, %v2289
        %v2355 = vadd.f32 %v2125, %v2291
        %v2356 = vadd.f32 %v2126, %v2294
        %v2357 = vadd.f32 %v2127, %v2296
        %v2358 = vadd.f32 %v2128, %v2299
        %v2359 = vadd.f32 %v2129, %v2301
        %v2360 = vadd.f32 %v2130, %v2304
        %v2361 = vadd.f32 %v2131, %v2306
        %v2362 = vadd.f32 %v2132, %v2309
        %v2363 = vadd.f32 %v2133, %v2311
        %v2364 = vadd.f32 %v2134, %v2314
        %v2365 = vadd.f32 %v2135, %v2316
        %v2366 = vadd.f32 %v2136, %v2319
        %v2367 = vadd.f32 %v2137, %v2321
        %v2368 = vadd.f32 %v2138, %v2324
        %v2369 = vadd.f32 %v2139, %v2326
        %v2370 = vadd.f32 %v2140, %v2329
        %v2371 = vadd.f32 %v2141, %v2331
        %v2372 = vadd.f32 %v2142, %v2334
        %v2373 = vadd.f32 %v2143, %v2336
        %v2374 = vld [vmem:[%s3] sm:$0x1]
        %v2376 = vperm.slane %v2374, 0
        %v2378 = vadd.f32 %v2338, %v2376
        %v2379 = vadd.f32 %v2339, %v2376
        %v2380 = vadd.f32 %v2340, %v2376
        %v2381 = vadd.f32 %v2341, %v2376
        %v2382 = vadd.f32 %v2342, %v2376
        %v2383 = vadd.f32 %v2343, %v2376
        %v2384 = vadd.f32 %v2344, %v2376
        %v2385 = vadd.f32 %v2345, %v2376
        %v2386 = vadd.f32 %v2346, %v2376
        %v2387 = vadd.f32 %v2347, %v2376
        %v2388 = vadd.f32 %v2348, %v2376
        %v2389 = vadd.f32 %v2349, %v2376
        %v2390 = vadd.f32 %v2350, %v2376
        %v2391 = vadd.f32 %v2351, %v2376
        %v2392 = vadd.f32 %v2352, %v2376
        %v2393 = vadd.f32 %v2353, %v2376
        %v2394 = vadd.f32 %v2354, %v2376
        %v2395 = vadd.f32 %v2355, %v2376
        %v2396 = vadd.f32 %v2356, %v2376
        %v2397 = vadd.f32 %v2357, %v2376
        %v2398 = vadd.f32 %v2358, %v2376
        %v2399 = vadd.f32 %v2359, %v2376
        %v2400 = vadd.f32 %v2360, %v2376
        %v2401 = vadd.f32 %v2361, %v2376
        %v2402 = vadd.f32 %v2362, %v2376
        %v2403 = vadd.f32 %v2363, %v2376
        %v2404 = vadd.f32 %v2364, %v2376
        %v2405 = vadd.f32 %v2365, %v2376
        %v2406 = vadd.f32 %v2366, %v2376
        %v2407 = vadd.f32 %v2367, %v2376
        %v2408 = vadd.f32 %v2368, %v2376
        %v2409 = vadd.f32 %v2369, %v2376
        %v2410 = vadd.f32 %v2370, %v2376
        %v2411 = vadd.f32 %v2371, %v2376
        %v2412 = vadd.f32 %v2372, %v2376
        %v2413 = vadd.f32 %v2373, %v2376
        %v2414 = vmax.f32 %v2378, 0.0
        %v2415 = vmax.f32 %v2379, 0.0
        %v2416 = vmax.f32 %v2380, 0.0
        %v2417 = vmax.f32 %v2381, 0.0
        %v2418 = vmax.f32 %v2382, 0.0
        %v2419 = vmax.f32 %v2383, 0.0
        %v2420 = vmax.f32 %v2384, 0.0
        %v2421 = vmax.f32 %v2385, 0.0
        %v2422 = vmax.f32 %v2386, 0.0
        %v2423 = vmax.f32 %v2387, 0.0
        %v2424 = vmax.f32 %v2388, 0.0
        %v2425 = vmax.f32 %v2389, 0.0
        %v2426 = vmax.f32 %v2390, 0.0
        %v2427 = vmax.f32 %v2391, 0.0
        %v2428 = vmax.f32 %v2392, 0.0
        %v2429 = vmax.f32 %v2393, 0.0
        %v2430 = vmax.f32 %v2394, 0.0
        %v2431 = vmax.f32 %v2395, 0.0
        %v2432 = vmax.f32 %v2396, 0.0
        %v2433 = vmax.f32 %v2397, 0.0
        %v2434 = vmax.f32 %v2398, 0.0
        %v2435 = vmax.f32 %v2399, 0.0
        %v2436 = vmax.f32 %v2400, 0.0
        %v2437 = vmax.f32 %v2401, 0.0
        %v2438 = vmax.f32 %v2402, 0.0
        %v2439 = vmax.f32 %v2403, 0.0
        %v2440 = vmax.f32 %v2404, 0.0
        %v2441 = vmax.f32 %v2405, 0.0
        %v2442 = vmax.f32 %v2406, 0.0
        %v2443 = vmax.f32 %v2407, 0.0
        %v2444 = vmax.f32 %v2408, 0.0
        %v2445 = vmax.f32 %v2409, 0.0
        %v2446 = vmax.f32 %v2410, 0.0
        %v2447 = vmax.f32 %v2411, 0.0
        %v2448 = vmax.f32 %v2412, 0.0
        %v2449 = vmax.f32 %v2413, 0.0
        %v2450 = vld [vmem:[%s1] sm:$0x7]
        %v2451 = vpack.c.bf16 %v2415, %v2414
        %v2452 = vpack.c.bf16 %v2417, %v2416
        %v2453 = vpack.c.bf16 %v2419, %v2418
        %v2454 = vpack.c.bf16 %v2421, %v2420
        %v2455 = vpack.c.bf16 %v2423, %v2422
        %v2456 = vpack.c.bf16 %v2425, %v2424
        %v2457 = vpack.c.bf16 %v2427, %v2426
        %v2458 = vpack.c.bf16 %v2429, %v2428
        %v2459 = vpack.c.bf16 %v2431, %v2430
        %v2460 = vpack.c.bf16 %v2433, %v2432
        %v2461 = vpack.c.bf16 %v2435, %v2434
        %v2462 = vpack.c.bf16 %v2437, %v2436
        %v2463 = vpack.c.bf16 %v2439, %v2438
        %v2464 = vpack.c.bf16 %v2441, %v2440
        %v2465 = vpack.c.bf16 %v2443, %v2442
        %v2466 = vpack.c.bf16 %v2445, %v2444
        %v2467 = vpack.c.bf16 %v2447, %v2446
        %v2468 = vpack.c.bf16 %v2449, %v2448
        %2470 = vst [vmem:[#allocation1] ss:$9 sm:$0xff] %v2450
        %v2471 = vld [vmem:[#allocation1] sm:$0xff]
        %v2472 = vld [vmem:[#allocation1 + $0x9] sm:$0xff]
        %v2473 = vld [vmem:[#allocation1 + $0x12] sm:$0xff]
        %vm2476 = vcmask 261120
        %v2477 = vsel %vm2476, %v2473, 0
        %2479 = vmatpush.bf16.msra.mxu0 %v2458
        %2480 = vmatpush.bf16.msra.mxu0 %v2457
        %2481 = vmatpush.bf16.msra.mxu0 %v2456
        %2482 = vmatpush.bf16.msra.mxu0 %v2455
        %2483 = vmatpush.bf16.msra.mxu0 %v2454
        %2484 = vmatpush.bf16.msra.mxu0 %v2453
        %2485 = vmatpush.bf16.msra.mxu0 %v2452
        %2486 = vmatpush.bf16.msra.mxu0 %v2451
        %2487 = vmatmul.bf16.gmra.mxu0 %v2471
        %v2488 = vpop.f32.mrf.mxu0
        %v2489 = vadd.f32 0.0, %v2488
        %v2490 = vpop.f32.mrf.mxu0
        %2491 = vdwg.mxu0
        %2492 = vmatpush.bf16.msra.mxu0 %v2466
        %2493 = vmatpush.bf16.msra.mxu0 %v2465
        %2494 = vmatpush.bf16.msra.mxu0 %v2464
        %2495 = vmatpush.bf16.msra.mxu0 %v2463
        %2496 = vmatpush.bf16.msra.mxu0 %v2462
        %2497 = vmatpush.bf16.msra.mxu0 %v2461
        %2498 = vmatpush.bf16.msra.mxu0 %v2460
        %2499 = vmatpush.bf16.msra.mxu0 %v2459
        %2500 = vmatmul.bf16.gmra.mxu0 %v2472
        %v2501 = vpop.f32.mrf.mxu0
        %v2502 = vadd.f32 %v2489, %v2501
        %v2503 = vpop.f32.mrf.mxu0
        %2504 = vdwg.mxu0
        %2505 = vmatpush.bf16.msra.mxu0 0
        %2506 = vmatpush.bf16.msra.mxu0 0
        %2507 = vmatpush.bf16.msra.mxu0 0
        %2508 = vmatpush.bf16.msra.mxu0 0
        %2509 = vmatpush.bf16.msra.mxu0 0
        %2510 = vmatpush.bf16.msra.mxu0 0
        %2511 = vmatpush.bf16.msra.mxu0 %v2468
        %2512 = vmatpush.bf16.msra.mxu0 %v2467
        %2513 = vmatmul.bf16.gmra.mxu0 %v2477
        %v2514 = vpop.f32.mrf.mxu0
        %v2515 = vadd.f32 %v2502, %v2514
        %v2516 = vpop.f32.mrf.mxu0
        %2517 = vdwg.mxu0
        %v2518 = vpack.c.bf16 %v2515, %v2515
        %v2519 = vld [vmem:[%s4] sm:$0xf]
        %v2520 = vld [vmem:[%s4 + $0x4] sm:$0xf]
        %v2521 = vld [vmem:[%s4 + $0x8] sm:$0xf]
        %v2522 = vld [vmem:[%s4 + $0xc] sm:$0xf]
        %v2523 = vld [vmem:[%s5] sm:$0x1]
        %v2528 = vunpack.c.l.b16 %v2519
        %v2529 = vunpack.c.l.b16 %v2520
        %v2530 = vunpack.c.l.b16 %v2521
        %v2531 = vunpack.c.l.b16 %v2522
        %v2532 = vpack.c.b16 %v2529, %v2528
        %v2533 = vpack.c.b16 %v2531, %v2530
        %v2537 = vsel %vm2476, %v2518, 0
        %2539 = vmatpush.bf16.msra.mxu0 0
        %2540 = vmatpush.bf16.msra.mxu0 0
        %2541 = vmatpush.bf16.msra.mxu0 0
        %2542 = vmatpush.bf16.msra.mxu0 0
        %2543 = vmatpush.bf16.msra.mxu0 0
        %2544 = vmatpush.bf16.msra.mxu0 0
        %2545 = vmatpush.bf16.msra.mxu0 %v2533
        %2546 = vmatpush.bf16.msra.mxu0 %v2532
        %2547 = vmatmul.bf16.gmra.mxu0 %v2537
        %v2548 = vpop.f32.mrf.mxu0
        %v2549 = vadd.f32 %v2523, %v2548
        %v2550 = vpop.f32.mrf.mxu0
        %2551 = vdwg.mxu0
        %2552 = vst [vmem:[%s243] sm:$0x1] %v2549
        %s2553 = sand.u32 %s159, 1
        %s2554 = scalar_lea.sflag [#allocation3], %s2553
        %s2555 = sand.u32 %s159, 1
        %s2556 = scalar_lea.vmem [#allocation2], %s2555
        // Predicated region
        $region45: #{network_forward.1} parent=43 // pred_check
          %p2557 = pneg %p169
        $region46: #{network_forward.1} parent=43 // pred_check_branch
          %2559 = sbr.rel (%p2557) target = $region48
        $region47: #{network_forward.1} parent=43 // pred_region
          %2561 = vsyncadd %s2554, 0
          %s2562 = scalar_lea.hbm %s6, %s20
          %s2564 = sshll.u32 %s2556, 4
          %s2565 = int_to_ptr.vmem [resolvable:$true] %s2564
          %s2566 = sshll.u32 %s2562, 4
          %s2567 = int_to_ptr.hbm [resolvable:$true] %s2566
          %2569 = dma.vmem_to_hbm [thread:$0]  %s2565, 16, %s2567, %s2554
        $region48: #{network_forward.1} parent=43 // pred_fallthru
          _
      $region44: #{network_forward.1} parent=5 // pred_fallthru
        _
      %p2570 = scmp.le.s32.totalorder 2, %s15
      // Predicated region
      $region49: #{network_forward.1} parent=5 // pred_check
        %p2571 = pneg %p2570
      $region50: #{network_forward.1} parent=5 // pred_check_branch
        %2573 = sbr.rel (%p2571) target = $region52
      $region51: #{network_forward.1} parent=5 // pred_region
        %s2574 = ssub.s32 %s15, 2
        // Predicated region
        $region53: #{network_forward.1} parent=51 // pred_check
          %p2575 = pneg %p175
        $region54: #{network_forward.1} parent=51 // pred_check_branch
          %2577 = sbr.rel (%p2575) target = $region56
        $region55: #{network_forward.1} parent=51 // pred_region
          %s2578 = sand.u32 %s160, 1
          %s2579 = scalar_lea.sflag [#allocation3], %s2578
          %s2580 = sand.u32 %s160, 1
          %s2581 = scalar_lea.vmem [#allocation2], %s2580
          %2583 = dma.done %s2579, 16
        $region56: #{network_forward.1} parent=51 // pred_fallthru
          _
      $region52: #{network_forward.1} parent=5 // pred_fallthru
        _
    $region6: #{network_forward.1} parent=1 // loop_footer
      %s19 = sadd.s32 1, %s15
    $region7: #{network_forward.1} parent=1 // loop_footer_branch
      %14 = sbr.rel target = $region3
    $region8: #{network_forward.1} parent=1 // loop_exit
      _
    %2584 = vsyncpa [#allocation3], 1
    %s2585 = scalar_lea.sflag [#allocation3], 1
    %2586 = vsyncpa %s2585, 1

</llo_original>
